<compile_context>
chip_gen: v7x
topology: tpu7x:2x2x1
jax: 0.10.0
libtpu: 0.0.40
codegen_flags: <defaults>
</compile_context>

<pallas_src>
import functools
import types

import numpy as np
import jax
import jax.numpy as jnp
from jax import lax
from jax.experimental import pallas as pl
from jax.experimental.pallas import tpu as pltpu


NPAD = 128                   # lane-dense padded width for params / outputs
MXU_DTYPE = jnp.bfloat16     # conv2/conv3 MXU operand dtype (f32 accumulate);
                             # flip to jnp.float32 for strict-f32 runs.
K23 = 8                      # conv2/conv3 kernel size (hardcoded in the module)


# ----------------------------- config ---------------------------------------
class Config:
    input_channels = 4
    kernel_size = 8
    stride = 1
    dropout = 0.35
    final_out_channels = 32
    features_len = 4          # final pooled length for seq_len=16 (checked below)
    num_classes = 5


# ----------------------------- geometry --------------------------------------
def _geom(B, L, cfg):
    K1 = cfg.kernel_size
    C0, C1, C2, C3 = cfg.input_channels, 32, 64, cfg.final_out_channels
    p1 = K1 // 2
    Lp1 = L + 2 * p1;  Lo1 = Lp1 - K1 + 1;  P1 = Lo1 // 2 + 1
    Lp2 = P1 + 2 * 4;  Lo2 = Lp2 - K23 + 1; P2 = Lo2 // 2 + 1
    Lp3 = P2 + 2 * 4;  Lo3 = Lp3 - K23 + 1; P3 = Lo3 // 2 + 1
    rnd8 = lambda n: ((n + 7) // 8) * 8
    N1, N2, N3 = B * Lp1, B * Lp2, B * Lp3
    return types.SimpleNamespace(
        B=B, K1=K1, C0=C0, C1=C1, C2=C2, C3=C3, p1=p1,
        Lp1=Lp1, Lp2=Lp2, Lp3=Lp3, Lo1=Lo1, Lo2=Lo2, Lo3=Lo3,
        P1=P1, P2=P2, P3=P3, N1=N1, N2=N2, N3=N3,
        R1=rnd8(N1 + K1 - 1), R2=rnd8(N2 + K23 - 1), R3=rnd8(N3 + K23 - 1),
        RP=P3 * 8)


# ---------------- pooling selectors (numpy compile-time constants) ------------
def _pool_pair(B, Lp_in, L_valid, rows_out, row_of):
    """Stacked [G_left; G_right] 0/1 selector for MaxPool1d(2, 2, padding=1).

    Input rows are b*Lp_in + i (only i < L_valid are valid conv outputs); output
    row row_of(b, j) receives source 2j-1 (left) / 2j (right).  Rows that would
    read the pad (or nothing) stay all-zero; substituting 0 for -inf is valid
    ONLY because the pooled values are post-ReLU (>= 0).
    """
    P = L_valid // 2 + 1
    gl = np.zeros((rows_out, B * Lp_in), np.float32)
    gr = np.zeros((rows_out, B * Lp_in), np.float32)
    for b in range(B):
        for j in range(P):
            r = row_of(b, j)
            if 2 * j - 1 >= 0:
                gl[r, b * Lp_in + 2 * j - 1] = 1.0
            if 2 * j < L_valid:
                gr[r, b * Lp_in + 2 * j] = 1.0
    return np.concatenate([gl, gr], axis=0)


def _build_selectors(g):
    # Layer-1/2 selectors emit the NEXT conv's zero-padding rows directly
    # (output row b*Lp_next + 4 + j); layer-3 emits a p-major, 8-row-padded slab.
    s1 = _pool_pair(g.B, g.Lp1, g.Lo1, g.R2, lambda b, j: b * g.Lp2 + 4 + j)
    s2 = _pool_pair(g.B, g.Lp2, g.Lo2, g.R3, lambda b, j: b * g.Lp3 + 4 + j)
    s3 = _pool_pair(g.B, g.Lp3, g.Lo3, g.RP, lambda b, j: j * 8 + b)
    pad = lambda a: np.pad(a, ((0, 0), (0, NPAD - a.shape[1])))
    return np.concatenate([pad(s1), pad(s2), pad(s3)], axis=0)   # (2R2+2R3+2RP, 128)


# ------------------------- fused Pallas kernel --------------------------------
def encoder_kernel(x_ref, cpar_ref, gsel_ref, wq_ref, wfc_ref,
                   logits_ref, feats_ref, slab2_ref, slab3_ref, *, g):
    f32 = jnp.float32
    rbn = g.K1 * g.C0                       # first BN row inside cpar

    def bn_relu(acc, row, c):
        scale = cpar_ref[rbn + row:rbn + row + 1, 0:c]
        shift = cpar_ref[rbn + row + 1:rbn + row + 2, 0:c]
        return jnp.maximum(acc * scale + shift, 0.0)

    def pool(y, gofs, grows, gcols):
        # One MXU matmul with the stacked [G_left; G_right] selector, then an
        # 8-aligned sublane split + max.  NOTE: zero selector rows stand in for
        # -inf MaxPool padding; valid only because y is post-ReLU (>= 0).
        sel = gsel_ref[gofs:gofs + 2 * grows, 0:gcols]
        z = jnp.dot(sel, y, preferred_element_type=f32)
        return jnp.maximum(z[0:grows, :], z[grows:2 * grows, :])

    # ---- block 1: Conv1d(C0->32, K1, pad K1//2) + BN + ReLU + MaxPool ---------
    lhs1 = jnp.concatenate([x_ref[t:t + g.N1, :] for t in range(g.K1)], axis=1)
    y1 = jnp.dot(lhs1, cpar_ref[0:g.K1 * g.C0, 0:g.C1], preferred_element_type=f32)
    y1 = bn_relu(y1, 0, g.C1)
    slab2_ref[...] = pool(y1, 0, g.R2, g.N1)       # pooled + conv2 zero padding
    # (Dropout after block 1: identity in eval mode.)

    # ---- block 2: Conv1d(32->64, 8, pad 4) + BN + ReLU + MaxPool --------------
    lhs2 = jnp.concatenate([slab2_ref[t:t + g.N2, :] for t in range(K23)], axis=1)
    y2 = jnp.dot(lhs2.astype(MXU_DTYPE), wq_ref[0:K23 * g.C1, 0:g.C2],
                 preferred_element_type=f32)
    y2 = bn_relu(y2, 2, g.C2)
    slab3_ref[...] = pool(y2, 2 * g.R2, g.R3, g.N2)

    # ---- block 3: Conv1d(64->C3, 8, pad 4) + BN + ReLU + MaxPool --------------
    lhs3 = jnp.concatenate([slab3_ref[t:t + g.N3, :] for t in range(K23)], axis=1)
    y3 = jnp.dot(lhs3.astype(MXU_DTYPE),
                 wq_ref[K23 * g.C1:K23 * g.C1 + K23 * g.C2, :],
                 preferred_element_type=f32)
    y3 = bn_relu(y3, 4, NPAD)                      # C3 lane-padded to 128 (pads are 0)
    pool3 = pool(y3, 2 * g.R2 + 2 * g.R3, g.RP, g.N3)   # (P3*8, 128), p-major
    feats_ref[...] = pool3                               # lane/sublane-dense store

    # ---- linear head: P3 accumulated matmuls + bias (f32; operands are tiny) ---
    acc = jnp.dot(pool3[0:8, 0:g.C3], wfc_ref[0], preferred_element_type=f32)
    for p in range(1, g.P3):
        acc = acc + jnp.dot(pool3[8 * p:8 * (p + 1), 0:g.C3], wfc_ref[p],
                            preferred_element_type=f32)
    logits_ref[...] = acc + cpar_ref[rbn + 6:rbn + 7, :]


# ----------------------------- wrapper (glue) ---------------------------------
def encoder_forward(params, x_ncl, cfg):
    """x_ncl: (B, C_in, L) like the PyTorch module. Returns (logits, features_NCL)."""
    assert cfg.stride == 1  # TODO(synk): only stride=1 supported
    B, C0, L = x_ncl.shape
    g = _geom(B, L, cfg)
    assert g.P3 == cfg.features_len
    assert B <= 8  # TODO(synk): add a parallel batch grid for larger batches
    f32 = jnp.float32

    # ---- input slab: per batch [pad | x | pad] rows + zero tail, channels-last --
    xb = jnp.transpose(x_ncl, (0, 2, 1)).astype(f32)                 # (B, L, C0)
    zp = jnp.zeros((B, g.p1, C0), f32)
    x_slab = jnp.concatenate([zp, xb, zp], axis=1).reshape(B * g.Lp1, C0)
    x_slab = jnp.concatenate(
        [x_slab, jnp.zeros((g.R1 - B * g.Lp1, C0), f32)], axis=0)    # (R1, C0)

    # ---- packed f32 constants: conv1 weight, BN rows, FC bias -------------------
    def row128(v):
        v = jnp.reshape(v, (1, -1)).astype(f32)
        return jnp.pad(v, ((0, 0), (0, NPAD - v.shape[1])))

    w1 = jnp.pad(params["w1"].reshape(g.K1 * g.C0, g.C1).astype(f32),
                 ((0, 0), (0, NPAD - g.C1)))
    cpar = jnp.concatenate(
        [w1,
         row128(params["s1"]), row128(params["t1"]),
         row128(params["s2"]), row128(params["t2"]),
         row128(params["s3"]), row128(params["t3"]),
         row128(params["bfc"]), jnp.zeros((1, NPAD), f32)], axis=0)  # (K1*C0+8, 128)

    # ---- packed conv2/conv3 weights (lane-padded, MXU dtype) --------------------
    w2 = jnp.pad(params["w2"].reshape(K23 * g.C1, g.C2), ((0, 0), (0, NPAD - g.C2)))
    w3 = jnp.pad(params["w3"].reshape(K23 * g.C2, g.C3), ((0, 0), (0, NPAD - g.C3)))
    wq = jnp.concatenate([w2, w3], axis=0).astype(MXU_DTYPE)         # (K23*(C1+C2), 128)

    # ---- FC weight: PyTorch (c,p)-major flatten -> (p, c, n), class dim padded ---
    n_cls = params["wfc"].shape[1]
    wfc = params["wfc"].reshape(g.C3, g.P3, n_cls).transpose(1, 0, 2)
    wfc = jnp.pad(wfc, ((0, 0), (0, 0), (0, NPAD - n_cls))).astype(f32)  # (P3, C3, 128)

    # ---- pooling selectors: numpy compile-time constants -------------------------
    gsel = jnp.asarray(_build_selectors(g))                          # (2R2+2R3+2RP, 128)

    kern = functools.partial(encoder_kernel, g=g)
    vmem = pl.BlockSpec(memory_space=pltpu.MemorySpace.VMEM)
    logits_pad, feats_pad = pl.pallas_call(
        kern,
        out_shape=(jax.ShapeDtypeStruct((8, NPAD), f32),
                   jax.ShapeDtypeStruct((g.RP, NPAD), f32)),
        in_specs=[vmem] * 5,
        out_specs=(vmem, vmem),
        scratch_shapes=[pltpu.VMEM((g.R2, g.C1), f32),
                        pltpu.VMEM((g.R3, g.C2), f32)],
    )(x_slab, cpar, gsel, wq, wfc)

    logits = logits_pad[:B, :n_cls]
    feats = feats_pad.reshape(g.P3, 8, NPAD)[:, :B, :g.C3]           # (P3, B, C3)
    feats_ncl = jnp.transpose(feats, (1, 2, 0))                      # (B, C3, P3)
    return logits, feats_ncl


# -------------------- deterministic parameter init ----------------------------
def init_params(key, cfg):
    keys = jax.random.split(key, 17)
    eps = 1e-5

    def conv_w(k, kk, ci, co):
        return jax.random.normal(k, (kk, ci, co), jnp.float32) / jnp.sqrt(
            jnp.float32(kk * ci))

    def bn_fold(k4, c):
        kg, kb, km, kv = k4
        gamma = 1.0 + 0.1 * jax.random.normal(kg, (c,), jnp.float32)
        beta = 0.1 * jax.random.normal(kb, (c,), jnp.float32)
        mean = 0.1 * jax.random.normal(km, (c,), jnp.float32)
        var = jax.random.uniform(kv, (c,), jnp.float32, minval=0.5, maxval=1.5)
        scale = gamma * lax.rsqrt(var + eps)
        shift = beta - mean * scale
        return scale.reshape(1, c), shift.reshape(1, c)

    s1, t1 = bn_fold(keys[3:7], 32)
    s2, t2 = bn_fold(keys[7:11], 64)
    s3, t3 = bn_fold(keys[11:15], cfg.final_out_channels)
    fdim = cfg.features_len * cfg.final_out_channels
    return dict(
        w1=conv_w(keys[0], cfg.kernel_size, cfg.input_channels, 32),
        w2=conv_w(keys[1], 8, 32, 64),
        w3=conv_w(keys[2], 8, 64, cfg.final_out_channels),
        s1=s1, t1=t1, s2=s2, t2=t2, s3=s3, t3=t3,
        wfc=jax.random.normal(keys[15], (fdim, cfg.num_classes), jnp.float32)
        / jnp.sqrt(jnp.float32(fdim)),
        bfc=0.1 * jax.random.normal(keys[16], (1, cfg.num_classes), jnp.float32),
    )


# ---------------------- pure-JAX reference (NCL) ------------------------------
def reference_forward(params, x_ncl, cfg):
    def block(x, w_kio, scale, shift, pad):
        w_oik = jnp.transpose(w_kio, (2, 1, 0))  # (C_out, C_in, K)
        y = lax.conv_general_dilated(
            x, w_oik, (1,), [(pad, pad)], dimension_numbers=("NCH", "OIH", "NCH"))
        y = y * scale.reshape(1, -1, 1) + shift.reshape(1, -1, 1)
        y = jnp.maximum(y, 0.0)
        return lax.reduce_window(
            y, -jnp.inf, lax.max, (1, 1, 2), (1, 1, 2), ((0, 0), (0, 0), (1, 1)))

    x = block(x_ncl, params["w1"], params["s1"], params["t1"], cfg.kernel_size // 2)
    x = block(x, params["w2"], params["s2"], params["t2"], 4)
    x = block(x, params["w3"], params["s3"], params["t3"], 4)
    flat = x.reshape(x.shape[0], -1)
    logits = flat @ params["wfc"] + params["bfc"]
    return logits, x


# --------------------------------- main ---------------------------------------
if __name__ == "__main__":
    cfg = Config()
    key = jax.random.PRNGKey(0)
    kx, kp = jax.random.split(key)
    B, L = 2, 16
    x_in = jax.random.normal(kx, (B, cfg.input_channels, L), jnp.float32)  # NCL
    params = init_params(kp, cfg)

    fwd = jax.jit(functools.partial(encoder_forward, cfg=cfg))
    logits, feats = fwd(params, x_in)
    jax.block_until_ready((logits, feats))

    assert logits.shape == (B, cfg.num_classes)
    assert feats.shape == (B, cfg.final_out_channels, cfg.features_len)

    ref_logits, ref_feats = reference_forward(params, x_in, cfg)
    assert jnp.allclose(feats, ref_feats, atol=2e-2, rtol=2e-2), "features mismatch"
    assert jnp.allclose(logits, ref_logits, atol=2e-2, rtol=2e-2), "logits mismatch"

    print("KERNEL_OK")
</pallas_src>

<mosaic_0001>
module attributes {stable_mosaic.version = 11 : i64} {
  func.func @encoder_kernel(%arg0: memref<56x4xf32, #tpu.memory_space<vmem>>, %arg1: memref<40x128xf32, #tpu.memory_space<vmem>>, %arg2: memref<240x128xf32, #tpu.memory_space<vmem>>, %arg3: memref<768x128xbf16, #tpu.memory_space<vmem>>, %arg4: memref<4x32x128xf32, #tpu.memory_space<vmem>>, %arg5: memref<8x128xf32, #tpu.memory_space<vmem>>, %arg6: memref<32x128xf32, #tpu.memory_space<vmem>>, %arg7: memref<48x32xf32, #tpu.memory_space<vmem>>, %arg8: memref<40x64xf32, #tpu.memory_space<vmem>>) attributes {dimension_semantics = [], scalar_prefetch = 0 : i64, scratch_operands = 2 : i64, tpu.core_type = #tpu.core_type<tc>} {
    %c0 = arith.constant 0 : index
    %c0_0 = arith.constant 0 : index
    %0 = vector.load %arg0[%c0, %c0_0] : memref<56x4xf32, #tpu.memory_space<vmem>>, vector<48x4xf32>
    %c1 = arith.constant 1 : index
    %c0_1 = arith.constant 0 : index
    %1 = vector.load %arg0[%c1, %c0_1] : memref<56x4xf32, #tpu.memory_space<vmem>>, vector<48x4xf32>
    %c2 = arith.constant 2 : index
    %c0_2 = arith.constant 0 : index
    %2 = vector.load %arg0[%c2, %c0_2] : memref<56x4xf32, #tpu.memory_space<vmem>>, vector<48x4xf32>
    %c3 = arith.constant 3 : index
    %c0_3 = arith.constant 0 : index
    %3 = vector.load %arg0[%c3, %c0_3] : memref<56x4xf32, #tpu.memory_space<vmem>>, vector<48x4xf32>
    %c4 = arith.constant 4 : index
    %c0_4 = arith.constant 0 : index
    %4 = vector.load %arg0[%c4, %c0_4] : memref<56x4xf32, #tpu.memory_space<vmem>>, vector<48x4xf32>
    %c5 = arith.constant 5 : index
    %c0_5 = arith.constant 0 : index
    %5 = vector.load %arg0[%c5, %c0_5] : memref<56x4xf32, #tpu.memory_space<vmem>>, vector<48x4xf32>
    %c6 = arith.constant 6 : index
    %c0_6 = arith.constant 0 : index
    %6 = vector.load %arg0[%c6, %c0_6] : memref<56x4xf32, #tpu.memory_space<vmem>>, vector<48x4xf32>
    %c7 = arith.constant 7 : index
    %c0_7 = arith.constant 0 : index
    %7 = vector.load %arg0[%c7, %c0_7] : memref<56x4xf32, #tpu.memory_space<vmem>>, vector<48x4xf32>
    %8 = tpu.concatenate %0, %1, %2, %3, %4, %5, %6, %7 in 1 : vector<48x4xf32>, vector<48x4xf32>, vector<48x4xf32>, vector<48x4xf32>, vector<48x4xf32>, vector<48x4xf32>, vector<48x4xf32>, vector<48x4xf32> -> vector<48x32xf32>
    %c0_8 = arith.constant 0 : index
    %c0_9 = arith.constant 0 : index
    %9 = vector.load %arg1[%c0_8, %c0_9] : memref<40x128xf32, #tpu.memory_space<vmem>>, vector<32x32xf32>
    %cst = arith.constant dense<0.000000e+00> : vector<48x32xf32>
    %10 = tpu.matmul %8, %9, %cst {dimension_numbers = #tpu.dot_dimension_numbers<[1], [0], [0], [1], [0, 0, 1, 1], [], []>} : vector<48x32xf32>, vector<32x32xf32>, vector<48x32xf32> -> vector<48x32xf32>
    %c32 = arith.constant 32 : index
    %c0_10 = arith.constant 0 : index
    %11 = vector.load %arg1[%c32, %c0_10] : memref<40x128xf32, #tpu.memory_space<vmem>>, vector<1x32xf32>
    %c33 = arith.constant 33 : index
    %c0_11 = arith.constant 0 : index
    %12 = vector.load %arg1[%c33, %c0_11] : memref<40x128xf32, #tpu.memory_space<vmem>>, vector<1x32xf32>
    %13 = vector.broadcast %11 : vector<1x32xf32> to vector<48x32xf32>
    %14 = arith.mulf %10, %13 : vector<48x32xf32>
    %15 = vector.broadcast %12 : vector<1x32xf32> to vector<48x32xf32>
    %16 = arith.addf %14, %15 : vector<48x32xf32>
    %cst_12 = arith.constant 0.000000e+00 : f32
    %17 = vector.broadcast %cst_12 : f32 to vector<48x32xf32>
    %18 = arith.maximumf %16, %17 : vector<48x32xf32>
    %c0_13 = arith.constant 0 : index
    %c0_14 = arith.constant 0 : index
    %19 = vector.load %arg2[%c0_13, %c0_14] : memref<240x128xf32, #tpu.memory_space<vmem>>, vector<96x48xf32>
    %cst_15 = arith.constant dense<0.000000e+00> : vector<96x32xf32>
    %20 = tpu.matmul %19, %18, %cst_15 {dimension_numbers = #tpu.dot_dimension_numbers<[1], [0], [0], [1], [0, 0, 1, 1], [], []>} : vector<96x48xf32>, vector<48x32xf32>, vector<96x32xf32> -> vector<96x32xf32>
    %21 = vector.extract_strided_slice %20 {offsets = [0, 0], sizes = [48, 32], strides = [1, 1]} : vector<96x32xf32> to vector<48x32xf32>
    %22 = vector.extract_strided_slice %20 {offsets = [48, 0], sizes = [48, 32], strides = [1, 1]} : vector<96x32xf32> to vector<48x32xf32>
    %23 = arith.maximumf %21, %22 : vector<48x32xf32>
    %c0_16 = arith.constant 0 : index
    %c0_17 = arith.constant 0 : index
    %24 = vector.load %arg7[%c0_16, %c0_17] : memref<48x32xf32, #tpu.memory_space<vmem>>, vector<48x32xf32>
    tpu.vector_store %arg7[%c0_16, %c0_17], %23 {strides = array<i32>} : memref<48x32xf32, #tpu.memory_space<vmem>>, vector<48x32xf32>,
    %c0_18 = arith.constant 0 : index
    %c0_19 = arith.constant 0 : index
    %25 = vector.load %arg7[%c0_18, %c0_19] : memref<48x32xf32, #tpu.memory_space<vmem>>, vector<34x32xf32>
    %c1_20 = arith.constant 1 : index
    %c0_21 = arith.constant 0 : index
    %26 = vector.load %arg7[%c1_20, %c0_21] : memref<48x32xf32, #tpu.memory_space<vmem>>, vector<34x32xf32>
    %c2_22 = arith.constant 2 : index
    %c0_23 = arith.constant 0 : index
    %27 = vector.load %arg7[%c2_22, %c0_23] : memref<48x32xf32, #tpu.memory_space<vmem>>, vector<34x32xf32>
    %c3_24 = arith.constant 3 : index
    %c0_25 = arith.constant 0 : index
    %28 = vector.load %arg7[%c3_24, %c0_25] : memref<48x32xf32, #tpu.memory_space<vmem>>, vector<34x32xf32>
    %c4_26 = arith.constant 4 : index
    %c0_27 = arith.constant 0 : index
    %29 = vector.load %arg7[%c4_26, %c0_27] : memref<48x32xf32, #tpu.memory_space<vmem>>, vector<34x32xf32>
    %c5_28 = arith.constant 5 : index
    %c0_29 = arith.constant 0 : index
    %30 = vector.load %arg7[%c5_28, %c0_29] : memref<48x32xf32, #tpu.memory_space<vmem>>, vector<34x32xf32>
    %c6_30 = arith.constant 6 : index
    %c0_31 = arith.constant 0 : index
    %31 = vector.load %arg7[%c6_30, %c0_31] : memref<48x32xf32, #tpu.memory_space<vmem>>, vector<34x32xf32>
    %c7_32 = arith.constant 7 : index
    %c0_33 = arith.constant 0 : index
    %32 = vector.load %arg7[%c7_32, %c0_33] : memref<48x32xf32, #tpu.memory_space<vmem>>, vector<34x32xf32>
    %33 = tpu.concatenate %25, %26, %27, %28, %29, %30, %31, %32 in 1 : vector<34x32xf32>, vector<34x32xf32>, vector<34x32xf32>, vector<34x32xf32>, vector<34x32xf32>, vector<34x32xf32>, vector<34x32xf32>, vector<34x32xf32> -> vector<34x256xf32>
    %34 = arith.truncf %33 : vector<34x256xf32> to vector<34x256xbf16>
    %c0_34 = arith.constant 0 : index
    %c0_35 = arith.constant 0 : index
    %35 = vector.load %arg3[%c0_34, %c0_35] : memref<768x128xbf16, #tpu.memory_space<vmem>>, vector<256x64xbf16>
    %cst_36 = arith.constant dense<0.000000e+00> : vector<34x64xf32>
    %36 = tpu.matmul %34, %35, %cst_36 {dimension_numbers = #tpu.dot_dimension_numbers<[1], [0], [0], [1], [0, 0, 1, 1], [], []>} : vector<34x256xbf16>, vector<256x64xbf16>, vector<34x64xf32> -> vector<34x64xf32>
    %c34 = arith.constant 34 : index
    %c0_37 = arith.constant 0 : index
    %37 = vector.load %arg1[%c34, %c0_37] : memref<40x128xf32, #tpu.memory_space<vmem>>, vector<1x64xf32>
    %c35 = arith.constant 35 : index
    %c0_38 = arith.constant 0 : index
    %38 = vector.load %arg1[%c35, %c0_38] : memref<40x128xf32, #tpu.memory_space<vmem>>, vector<1x64xf32>
    %39 = vector.broadcast %37 : vector<1x64xf32> to vector<34x64xf32>
    %40 = arith.mulf %36, %39 : vector<34x64xf32>
    %41 = vector.broadcast %38 : vector<1x64xf32> to vector<34x64xf32>
    %42 = arith.addf %40, %41 : vector<34x64xf32>
    %cst_39 = arith.constant 0.000000e+00 : f32
    %43 = vector.broadcast %cst_39 : f32 to vector<34x64xf32>
    %44 = arith.maximumf %42, %43 : vector<34x64xf32>
    %c96 = arith.constant 96 : index
    %c0_40 = arith.constant 0 : index
    %45 = vector.load %arg2[%c96, %c0_40] : memref<240x128xf32, #tpu.memory_space<vmem>>, vector<80x34xf32>
    %cst_41 = arith.constant dense<0.000000e+00> : vector<80x64xf32>
    %46 = tpu.matmul %45, %44, %cst_41 {dimension_numbers = #tpu.dot_dimension_numbers<[1], [0], [0], [1], [0, 0, 1, 1], [], []>} : vector<80x34xf32>, vector<34x64xf32>, vector<80x64xf32> -> vector<80x64xf32>
    %47 = vector.extract_strided_slice %46 {offsets = [0, 0], sizes = [40, 64], strides = [1, 1]} : vector<80x64xf32> to vector<40x64xf32>
    %48 = vector.extract_strided_slice %46 {offsets = [40, 0], sizes = [40, 64], strides = [1, 1]} : vector<80x64xf32> to vector<40x64xf32>
    %49 = arith.maximumf %47, %48 : vector<40x64xf32>
    %c0_42 = arith.constant 0 : index
    %c0_43 = arith.constant 0 : index
    %50 = vector.load %arg8[%c0_42, %c0_43] : memref<40x64xf32, #tpu.memory_space<vmem>>, vector<40x64xf32>
    tpu.vector_store %arg8[%c0_42, %c0_43], %49 {strides = array<i32>} : memref<40x64xf32, #tpu.memory_space<vmem>>, vector<40x64xf32>,
    %c0_44 = arith.constant 0 : index
    %c0_45 = arith.constant 0 : index
    %51 = vector.load %arg8[%c0_44, %c0_45] : memref<40x64xf32, #tpu.memory_space<vmem>>, vector<28x64xf32>
    %c1_46 = arith.constant 1 : index
    %c0_47 = arith.constant 0 : index
    %52 = vector.load %arg8[%c1_46, %c0_47] : memref<40x64xf32, #tpu.memory_space<vmem>>, vector<28x64xf32>
    %c2_48 = arith.constant 2 : index
    %c0_49 = arith.constant 0 : index
    %53 = vector.load %arg8[%c2_48, %c0_49] : memref<40x64xf32, #tpu.memory_space<vmem>>, vector<28x64xf32>
    %c3_50 = arith.constant 3 : index
    %c0_51 = arith.constant 0 : index
    %54 = vector.load %arg8[%c3_50, %c0_51] : memref<40x64xf32, #tpu.memory_space<vmem>>, vector<28x64xf32>
    %c4_52 = arith.constant 4 : index
    %c0_53 = arith.constant 0 : index
    %55 = vector.load %arg8[%c4_52, %c0_53] : memref<40x64xf32, #tpu.memory_space<vmem>>, vector<28x64xf32>
    %c5_54 = arith.constant 5 : index
    %c0_55 = arith.constant 0 : index
    %56 = vector.load %arg8[%c5_54, %c0_55] : memref<40x64xf32, #tpu.memory_space<vmem>>, vector<28x64xf32>
    %c6_56 = arith.constant 6 : index
    %c0_57 = arith.constant 0 : index
    %57 = vector.load %arg8[%c6_56, %c0_57] : memref<40x64xf32, #tpu.memory_space<vmem>>, vector<28x64xf32>
    %c7_58 = arith.constant 7 : index
    %c0_59 = arith.constant 0 : index
    %58 = vector.load %arg8[%c7_58, %c0_59] : memref<40x64xf32, #tpu.memory_space<vmem>>, vector<28x64xf32>
    %59 = tpu.concatenate %51, %52, %53, %54, %55, %56, %57, %58 in 1 : vector<28x64xf32>, vector<28x64xf32>, vector<28x64xf32>, vector<28x64xf32>, vector<28x64xf32>, vector<28x64xf32>, vector<28x64xf32>, vector<28x64xf32> -> vector<28x512xf32>
    %60 = arith.truncf %59 : vector<28x512xf32> to vector<28x512xbf16>
    %c256 = arith.constant 256 : index
    %c0_60 = arith.constant 0 : index
    %61 = vector.load %arg3[%c256, %c0_60] : memref<768x128xbf16, #tpu.memory_space<vmem>>, vector<512x128xbf16>
    %cst_61 = arith.constant dense<0.000000e+00> : vector<28x128xf32>
    %62 = tpu.matmul %60, %61, %cst_61 {dimension_numbers = #tpu.dot_dimension_numbers<[1], [0], [0], [1], [0, 0, 1, 1], [], []>} : vector<28x512xbf16>, vector<512x128xbf16>, vector<28x128xf32> -> vector<28x128xf32>
    %c36 = arith.constant 36 : index
    %c0_62 = arith.constant 0 : index
    %63 = vector.load %arg1[%c36, %c0_62] : memref<40x128xf32, #tpu.memory_space<vmem>>, vector<1x128xf32>
    %c37 = arith.constant 37 : index
    %c0_63 = arith.constant 0 : index
    %64 = vector.load %arg1[%c37, %c0_63] : memref<40x128xf32, #tpu.memory_space<vmem>>, vector<1x128xf32>
    %65 = vector.broadcast %63 : vector<1x128xf32> to vector<28x128xf32>
    %66 = arith.mulf %62, %65 : vector<28x128xf32>
    %67 = vector.broadcast %64 : vector<1x128xf32> to vector<28x128xf32>
    %68 = arith.addf %66, %67 : vector<28x128xf32>
    %cst_64 = arith.constant 0.000000e+00 : f32
    %69 = vector.broadcast %cst_64 : f32 to vector<28x128xf32>
    %70 = arith.maximumf %68, %69 : vector<28x128xf32>
    %c176 = arith.constant 176 : index
    %c0_65 = arith.constant 0 : index
    %71 = vector.load %arg2[%c176, %c0_65] : memref<240x128xf32, #tpu.memory_space<vmem>>, vector<64x28xf32>
    %cst_66 = arith.constant dense<0.000000e+00> : vector<64x128xf32>
    %72 = tpu.matmul %71, %70, %cst_66 {dimension_numbers = #tpu.dot_dimension_numbers<[1], [0], [0], [1], [0, 0, 1, 1], [], []>} : vector<64x28xf32>, vector<28x128xf32>, vector<64x128xf32> -> vector<64x128xf32>
    %73 = vector.extract_strided_slice %72 {offsets = [0, 0], sizes = [32, 128], strides = [1, 1]} : vector<64x128xf32> to vector<32x128xf32>
    %74 = vector.extract_strided_slice %72 {offsets = [32, 0], sizes = [32, 128], strides = [1, 1]} : vector<64x128xf32> to vector<32x128xf32>
    %75 = arith.maximumf %73, %74 : vector<32x128xf32>
    %c0_67 = arith.constant 0 : index
    %c0_68 = arith.constant 0 : index
    %76 = vector.load %arg6[%c0_67, %c0_68] : memref<32x128xf32, #tpu.memory_space<vmem>>, vector<32x128xf32>
    tpu.vector_store %arg6[%c0_67, %c0_68], %75 {strides = array<i32>} : memref<32x128xf32, #tpu.memory_space<vmem>>, vector<32x128xf32>,
    %77 = vector.extract_strided_slice %75 {offsets = [0, 0], sizes = [8, 32], strides = [1, 1]} : vector<32x128xf32> to vector<8x32xf32>
    %c0_69 = arith.constant 0 : index
    %c0_70 = arith.constant 0 : index
    %c0_71 = arith.constant 0 : index
    %78 = vector.load %arg4[%c0_69, %c0_70, %c0_71] : memref<4x32x128xf32, #tpu.memory_space<vmem>>, vector<1x32x128xf32>
    %79 = vector.shape_cast %78 : vector<1x32x128xf32> to vector<32x128xf32>
    %cst_72 = arith.constant dense<0.000000e+00> : vector<8x128xf32>
    %80 = tpu.matmul %77, %79, %cst_72 {dimension_numbers = #tpu.dot_dimension_numbers<[1], [0], [0], [1], [0, 0, 1, 1], [], []>} : vector<8x32xf32>, vector<32x128xf32>, vector<8x128xf32> -> vector<8x128xf32>
    %81 = vector.extract_strided_slice %75 {offsets = [8, 0], sizes = [8, 32], strides = [1, 1]} : vector<32x128xf32> to vector<8x32xf32>
    %c1_73 = arith.constant 1 : index
    %c0_74 = arith.constant 0 : index
    %c0_75 = arith.constant 0 : index
    %82 = vector.load %arg4[%c1_73, %c0_74, %c0_75] : memref<4x32x128xf32, #tpu.memory_space<vmem>>, vector<1x32x128xf32>
    %83 = vector.shape_cast %82 : vector<1x32x128xf32> to vector<32x128xf32>
    %cst_76 = arith.constant dense<0.000000e+00> : vector<8x128xf32>
    %84 = tpu.matmul %81, %83, %cst_76 {dimension_numbers = #tpu.dot_dimension_numbers<[1], [0], [0], [1], [0, 0, 1, 1], [], []>} : vector<8x32xf32>, vector<32x128xf32>, vector<8x128xf32> -> vector<8x128xf32>
    %85 = arith.addf %80, %84 : vector<8x128xf32>
    %86 = vector.extract_strided_slice %75 {offsets = [16, 0], sizes = [8, 32], strides = [1, 1]} : vector<32x128xf32> to vector<8x32xf32>
    %c2_77 = arith.constant 2 : index
    %c0_78 = arith.constant 0 : index
    %c0_79 = arith.constant 0 : index
    %87 = vector.load %arg4[%c2_77, %c0_78, %c0_79] : memref<4x32x128xf32, #tpu.memory_space<vmem>>, vector<1x32x128xf32>
    %88 = vector.shape_cast %87 : vector<1x32x128xf32> to vector<32x128xf32>
    %cst_80 = arith.constant dense<0.000000e+00> : vector<8x128xf32>
    %89 = tpu.matmul %86, %88, %cst_80 {dimension_numbers = #tpu.dot_dimension_numbers<[1], [0], [0], [1], [0, 0, 1, 1], [], []>} : vector<8x32xf32>, vector<32x128xf32>, vector<8x128xf32> -> vector<8x128xf32>
    %90 = arith.addf %85, %89 : vector<8x128xf32>
    %91 = vector.extract_strided_slice %75 {offsets = [24, 0], sizes = [8, 32], strides = [1, 1]} : vector<32x128xf32> to vector<8x32xf32>
    %c3_81 = arith.constant 3 : index
    %c0_82 = arith.constant 0 : index
    %c0_83 = arith.constant 0 : index
    %92 = vector.load %arg4[%c3_81, %c0_82, %c0_83] : memref<4x32x128xf32, #tpu.memory_space<vmem>>, vector<1x32x128xf32>
    %93 = vector.shape_cast %92 : vector<1x32x128xf32> to vector<32x128xf32>
    %cst_84 = arith.constant dense<0.000000e+00> : vector<8x128xf32>
    %94 = tpu.matmul %91, %93, %cst_84 {dimension_numbers = #tpu.dot_dimension_numbers<[1], [0], [0], [1], [0, 0, 1, 1], [], []>} : vector<8x32xf32>, vector<32x128xf32>, vector<8x128xf32> -> vector<8x128xf32>
    %95 = arith.addf %90, %94 : vector<8x128xf32>
    %c38 = arith.constant 38 : index
    %c0_85 = arith.constant 0 : index
    %96 = vector.load %arg1[%c38, %c0_85] : memref<40x128xf32, #tpu.memory_space<vmem>>, vector<1x128xf32>
    %97 = vector.broadcast %96 : vector<1x128xf32> to vector<8x128xf32>
    %98 = arith.addf %95, %97 : vector<8x128xf32>
    %c0_86 = arith.constant 0 : index
    %c0_87 = arith.constant 0 : index
    %99 = vector.load %arg5[%c0_86, %c0_87] : memref<8x128xf32, #tpu.memory_space<vmem>>, vector<8x128xf32>
    tpu.vector_store %arg5[%c0_86, %c0_87], %98 {strides = array<i32>} : memref<8x128xf32, #tpu.memory_space<vmem>>, vector<8x128xf32>,
    return
  }
}

</mosaic_0001>

<llo_original>
// kernel: encoder_forward.1
$region0: #{encoder_forward.1}
  #allocation0 [shape = 'u32[]', space=smem, size = 0x4, offset = 0x4, fixed_abs, tag = 'smem constant byte address 0x4 - core index']
  #allocation1 [shape = 'u32[144,128]{1,0:T(1,128)}', space=vmem, size = 0x12000, scoped, tag = 'internal scratch']
  #allocation2 [shape = 'f32[48,32]{1,0:T(8,128)}', space=vmem, size = 0x6000, scoped, tag = 'scratch operand']
  #allocation3 [shape = 'f32[40,64]{1,0:T(8,128)}', space=vmem, size = 0x5000, scoped, tag = 'scratch operand']
  %s0 = inlined_call_operand.vmem [shape: f32[56,4], index: 0, kind: input, shape index: {}]
  %s1 = inlined_call_operand.vmem [shape: f32[40,128], index: 1, kind: input, shape index: {}]
  %s2 = inlined_call_operand.vmem [shape: f32[240,128], index: 2, kind: input, shape index: {}]
  %s3 = inlined_call_operand.vmem [shape: bf16[768,128], index: 3, kind: input, shape index: {}]
  %s4 = inlined_call_operand.vmem [shape: f32[4,32,128], index: 4, kind: input, shape index: {}]
  %s5 = inlined_call_operand.vmem [shape: f32[8,128], index: 5, kind: output, shape index: {0}]
  %s6 = inlined_call_operand.vmem [shape: f32[32,128], index: 6, kind: output, shape index: {1}]
  %7 = xla_tuple %s5, %s6
  %s8 = sld [smem:[#allocation0]]
  $region38: #{encoder_forward.1} parent=0
    _
  %s10 = ssub.s32 1, %s8
  %s11 = scalar_select 0, %s10, %s8
  // Predicated region
  $region2: #{encoder_forward.1} parent=0 // pred_check
    _
  $region3: #{encoder_forward.1} parent=0 // pred_check_branch
    %13 = sbr.rel (0) target = $region5
  $region4: #{encoder_forward.1} parent=0 // pred_region
    _
  $region5: #{encoder_forward.1} parent=0 // pred_fallthru
    _
  // Predicated region
  $region6: #{encoder_forward.1} parent=0 // pred_check
    _
  $region7: #{encoder_forward.1} parent=0 // pred_check_branch
    %15 = sbr.rel (0) target = $region9
  $region8: #{encoder_forward.1} parent=0 // pred_region
    _
  $region9: #{encoder_forward.1} parent=0 // pred_fallthru
    _
  // Predicated region
  $region10: #{encoder_forward.1} parent=0 // pred_check
    _
  $region11: #{encoder_forward.1} parent=0 // pred_check_branch
    %17 = sbr.rel (0) target = $region13
  $region12: #{encoder_forward.1} parent=0 // pred_region
    _
  $region13: #{encoder_forward.1} parent=0 // pred_fallthru
    _
  // Predicated region
  $region14: #{encoder_forward.1} parent=0 // pred_check
    _
  $region15: #{encoder_forward.1} parent=0 // pred_check_branch
    %19 = sbr.rel (0) target = $region17
  $region16: #{encoder_forward.1} parent=0 // pred_region
    _
  $region17: #{encoder_forward.1} parent=0 // pred_fallthru
    _
  // Predicated region
  $region18: #{encoder_forward.1} parent=0 // pred_check
    _
  $region19: #{encoder_forward.1} parent=0 // pred_check_branch
    %21 = sbr.rel (0) target = $region21
  $region20: #{encoder_forward.1} parent=0 // pred_region
    _
  $region21: #{encoder_forward.1} parent=0 // pred_fallthru
    _
  %v23 = vld [vmem:[%s0] sm:$0xff]
  %v24 = vld [vmem:[%s0 + $0x8] sm:$0xff]
  %v25 = vld [vmem:[%s0 + $0x10] sm:$0xff]
  %v26 = vld [vmem:[%s0 + $0x18] sm:$0xff]
  %v27 = vld [vmem:[%s0 + $0x20] sm:$0xff]
  %v28 = vld [vmem:[%s0 + $0x28] sm:$0xff]
  %v29 = vld [vmem:[%s0 + $0x1] sm:$0xff]
  %v30 = vld [vmem:[%s0 + $0x9] sm:$0xff]
  %v31 = vld [vmem:[%s0 + $0x11] sm:$0xff]
  %v32 = vld [vmem:[%s0 + $0x19] sm:$0xff]
  %v33 = vld [vmem:[%s0 + $0x21] sm:$0xff]
  %v34 = vld [vmem:[%s0 + $0x29] sm:$0xff]
  %v35 = vld [vmem:[%s0 + $0x2] sm:$0xff]
  %v36 = vld [vmem:[%s0 + $0xa] sm:$0xff]
  %v37 = vld [vmem:[%s0 + $0x12] sm:$0xff]
  %v38 = vld [vmem:[%s0 + $0x1a] sm:$0xff]
  %v39 = vld [vmem:[%s0 + $0x22] sm:$0xff]
  %v40 = vld [vmem:[%s0 + $0x2a] sm:$0xff]
  %v41 = vld [vmem:[%s0 + $0x3] sm:$0xff]
  %v42 = vld [vmem:[%s0 + $0xb] sm:$0xff]
  %v43 = vld [vmem:[%s0 + $0x13] sm:$0xff]
  %v44 = vld [vmem:[%s0 + $0x1b] sm:$0xff]
  %v45 = vld [vmem:[%s0 + $0x23] sm:$0xff]
  %v46 = vld [vmem:[%s0 + $0x2b] sm:$0xff]
  %v47 = vld [vmem:[%s0 + $0x4] sm:$0xff]
  %v48 = vld [vmem:[%s0 + $0xc] sm:$0xff]
  %v49 = vld [vmem:[%s0 + $0x14] sm:$0xff]
  %v50 = vld [vmem:[%s0 + $0x1c] sm:$0xff]
  %v51 = vld [vmem:[%s0 + $0x24] sm:$0xff]
  %v52 = vld [vmem:[%s0 + $0x2c] sm:$0xff]
  %v53 = vld [vmem:[%s0 + $0x5] sm:$0xff]
  %v54 = vld [vmem:[%s0 + $0xd] sm:$0xff]
  %v55 = vld [vmem:[%s0 + $0x15] sm:$0xff]
  %v56 = vld [vmem:[%s0 + $0x1d] sm:$0xff]
  %v57 = vld [vmem:[%s0 + $0x25] sm:$0xff]
  %v58 = vld [vmem:[%s0 + $0x2d] sm:$0xff]
  %v59 = vld [vmem:[%s0 + $0x6] sm:$0xff]
  %v60 = vld [vmem:[%s0 + $0xe] sm:$0xff]
  %v61 = vld [vmem:[%s0 + $0x16] sm:$0xff]
  %v62 = vld [vmem:[%s0 + $0x1e] sm:$0xff]
  %v63 = vld [vmem:[%s0 + $0x26] sm:$0xff]
  %v64 = vld [vmem:[%s0 + $0x2e] sm:$0xff]
  %v65 = vld [vmem:[%s0 + $0x7] sm:$0xff]
  %v66 = vld [vmem:[%s0 + $0xf] sm:$0xff]
  %v67 = vld [vmem:[%s0 + $0x17] sm:$0xff]
  %v68 = vld [vmem:[%s0 + $0x1f] sm:$0xff]
  %v69 = vld [vmem:[%s0 + $0x27] sm:$0xff]
  %v70 = vld [vmem:[%s0 + $0x2f] sm:$0xff]
  %77 = vrot.lane.b32.xlu0 %v29, 4
  %v78 = vpop.permute.xlu0 %77
  %79 = vrot.lane.b32.xlu0 %v30, 4
  %v80 = vpop.permute.xlu0 %79
  %81 = vrot.lane.b32.xlu0 %v31, 4
  %v82 = vpop.permute.xlu0 %81
  %83 = vrot.lane.b32.xlu0 %v32, 4
  %v84 = vpop.permute.xlu0 %83
  %85 = vrot.lane.b32.xlu0 %v33, 4
  %v86 = vpop.permute.xlu0 %85
  %87 = vrot.lane.b32.xlu0 %v34, 4
  %v88 = vpop.permute.xlu0 %87
  %101 = vrot.lane.b32.xlu0 %v35, 8
  %v102 = vpop.permute.xlu0 %101
  %103 = vrot.lane.b32.xlu0 %v36, 8
  %v104 = vpop.permute.xlu0 %103
  %105 = vrot.lane.b32.xlu0 %v37, 8
  %v106 = vpop.permute.xlu0 %105
  %107 = vrot.lane.b32.xlu0 %v38, 8
  %v108 = vpop.permute.xlu0 %107
  %109 = vrot.lane.b32.xlu0 %v39, 8
  %v110 = vpop.permute.xlu0 %109
  %111 = vrot.lane.b32.xlu0 %v40, 8
  %v112 = vpop.permute.xlu0 %111
  %125 = vrot.lane.b32.xlu0 %v41, 12
  %v126 = vpop.permute.xlu0 %125
  %127 = vrot.lane.b32.xlu0 %v42, 12
  %v128 = vpop.permute.xlu0 %127
  %129 = vrot.lane.b32.xlu0 %v43, 12
  %v130 = vpop.permute.xlu0 %129
  %131 = vrot.lane.b32.xlu0 %v44, 12
  %v132 = vpop.permute.xlu0 %131
  %133 = vrot.lane.b32.xlu0 %v45, 12
  %v134 = vpop.permute.xlu0 %133
  %135 = vrot.lane.b32.xlu0 %v46, 12
  %v136 = vpop.permute.xlu0 %135
  %149 = vrot.lane.b32.xlu0 %v47, 16
  %v150 = vpop.permute.xlu0 %149
  %151 = vrot.lane.b32.xlu0 %v48, 16
  %v152 = vpop.permute.xlu0 %151
  %153 = vrot.lane.b32.xlu0 %v49, 16
  %v154 = vpop.permute.xlu0 %153
  %155 = vrot.lane.b32.xlu0 %v50, 16
  %v156 = vpop.permute.xlu0 %155
  %157 = vrot.lane.b32.xlu0 %v51, 16
  %v158 = vpop.permute.xlu0 %157
  %159 = vrot.lane.b32.xlu0 %v52, 16
  %v160 = vpop.permute.xlu0 %159
  %173 = vrot.lane.b32.xlu0 %v53, 20
  %v174 = vpop.permute.xlu0 %173
  %175 = vrot.lane.b32.xlu0 %v54, 20
  %v176 = vpop.permute.xlu0 %175
  %177 = vrot.lane.b32.xlu0 %v55, 20
  %v178 = vpop.permute.xlu0 %177
  %179 = vrot.lane.b32.xlu0 %v56, 20
  %v180 = vpop.permute.xlu0 %179
  %181 = vrot.lane.b32.xlu0 %v57, 20
  %v182 = vpop.permute.xlu0 %181
  %183 = vrot.lane.b32.xlu0 %v58, 20
  %v184 = vpop.permute.xlu0 %183
  %197 = vrot.lane.b32.xlu0 %v59, 24
  %v198 = vpop.permute.xlu0 %197
  %199 = vrot.lane.b32.xlu0 %v60, 24
  %v200 = vpop.permute.xlu0 %199
  %201 = vrot.lane.b32.xlu0 %v61, 24
  %v202 = vpop.permute.xlu0 %201
  %203 = vrot.lane.b32.xlu0 %v62, 24
  %v204 = vpop.permute.xlu0 %203
  %205 = vrot.lane.b32.xlu0 %v63, 24
  %v206 = vpop.permute.xlu0 %205
  %207 = vrot.lane.b32.xlu0 %v64, 24
  %v208 = vpop.permute.xlu0 %207
  %221 = vrot.lane.b32.xlu0 %v65, 28
  %v222 = vpop.permute.xlu0 %221
  %223 = vrot.lane.b32.xlu0 %v66, 28
  %v224 = vpop.permute.xlu0 %223
  %225 = vrot.lane.b32.xlu0 %v67, 28
  %v226 = vpop.permute.xlu0 %225
  %227 = vrot.lane.b32.xlu0 %v68, 28
  %v228 = vpop.permute.xlu0 %227
  %229 = vrot.lane.b32.xlu0 %v69, 28
  %v230 = vpop.permute.xlu0 %229
  %231 = vrot.lane.b32.xlu0 %v70, 28
  %v232 = vpop.permute.xlu0 %231
  %vm239 = vcmask 31744
  %v240 = vsel %vm239, %v23, %v78
  %v241 = vsel %vm239, %v24, %v80
  %v242 = vsel %vm239, %v25, %v82
  %v243 = vsel %vm239, %v26, %v84
  %v244 = vsel %vm239, %v27, %v86
  %v245 = vsel %vm239, %v28, %v88
  %vm246 = vcmask 64512
  %v247 = vsel %vm246, %v240, %v102
  %v248 = vsel %vm246, %v241, %v104
  %v249 = vsel %vm246, %v242, %v106
  %v250 = vsel %vm246, %v243, %v108
  %v251 = vsel %vm246, %v244, %v110
  %v252 = vsel %vm246, %v245, %v112
  %vm253 = vcmask 97280
  %v254 = vsel %vm253, %v247, %v126
  %v255 = vsel %vm253, %v248, %v128
  %v256 = vsel %vm253, %v249, %v130
  %v257 = vsel %vm253, %v250, %v132
  %v258 = vsel %vm253, %v251, %v134
  %v259 = vsel %vm253, %v252, %v136
  %vm260 = vcmask 130048
  %v261 = vsel %vm260, %v254, %v150
  %v262 = vsel %vm260, %v255, %v152
  %v263 = vsel %vm260, %v256, %v154
  %v264 = vsel %vm260, %v257, %v156
  %v265 = vsel %vm260, %v258, %v158
  %v266 = vsel %vm260, %v259, %v160
  %vm267 = vcmask 162816
  %v268 = vsel %vm267, %v261, %v174
  %v269 = vsel %vm267, %v262, %v176
  %v270 = vsel %vm267, %v263, %v178
  %v271 = vsel %vm267, %v264, %v180
  %v272 = vsel %vm267, %v265, %v182
  %v273 = vsel %vm267, %v266, %v184
  %vm274 = vcmask 195584
  %v275 = vsel %vm274, %v268, %v198
  %v276 = vsel %vm274, %v269, %v200
  %v277 = vsel %vm274, %v270, %v202
  %v278 = vsel %vm274, %v271, %v204
  %v279 = vsel %vm274, %v272, %v206
  %v280 = vsel %vm274, %v273, %v208
  %vm281 = vcmask 228352
  %v282 = vsel %vm281, %v275, %v222
  %v283 = vsel %vm281, %v276, %v224
  %v284 = vsel %vm281, %v277, %v226
  %v285 = vsel %vm281, %v278, %v228
  %v286 = vsel %vm281, %v279, %v230
  %v287 = vsel %vm281, %v280, %v232
  %v288 = vld [vmem:[%s1] sm:$0xff]
  %v289 = vld [vmem:[%s1 + $0x8] sm:$0xff]
  %v290 = vld [vmem:[%s1 + $0x10] sm:$0xff]
  %v291 = vld [vmem:[%s1 + $0x18] sm:$0xff]
  %vm292 = vcmask 261120
  %v294 = vsel %vm292, %v282, 0
  %v297 = vsel %vm292, %v283, 0
  %v300 = vsel %vm292, %v284, 0
  %v303 = vsel %vm292, %v285, 0
  %v306 = vsel %vm292, %v286, 0
  %v309 = vsel %vm292, %v287, 0
  %311 = vmatprep.subr.mxu0 0.0
  %312 = vmatpush1.msra.mxu0 %v288
  %313 = vmatprep.subr.mxu0 0.0
  %314 = vmatpush1.msra.mxu0 %v289
  %315 = vmatprep.subr.mxu0 0.0
  %316 = vmatpush1.msra.mxu0 %v290
  %317 = vmatprep.subr.mxu0 0.0
  %318 = vmatpush1.msra.mxu0 %v291
  %319 = vmatprep.subr.mxu0 0.0
  %320 = vmatpush1.msra.mxu0 0.0
  %321 = vmatprep.subr.mxu0 0.0
  %322 = vmatpush1.msra.mxu0 0.0
  %323 = vmatprep.subr.mxu0 0.0
  %324 = vmatpush1.msra.mxu0 0.0
  %325 = vmatprep.subr.mxu0 0.0
  %326 = vmatpush1.msra.mxu0 0.0
  %327 = vmatprep.subr.mxu0 0.0
  %328 = vmatpush1.msra.mxu0 0.0
  %329 = vmatprep.subr.mxu0 0.0
  %330 = vmatpush1.msra.mxu0 0.0
  %331 = vmatprep.subr.mxu0 0.0
  %332 = vmatpush1.msra.mxu0 0.0
  %333 = vmatprep.subr.mxu0 0.0
  %334 = vmatpush1.msra.mxu0 0.0
  %335 = vmatprep.subr.mxu0 0.0
  %336 = vmatpush1.msra.mxu0 0.0
  %337 = vmatprep.subr.mxu0 0.0
  %338 = vmatpush1.msra.mxu0 0.0
  %339 = vmatprep.subr.mxu0 0.0
  %340 = vmatpush1.msra.mxu0 0.0
  %341 = vmatprep.subr.mxu0 0.0
  %342 = vmatpush1.msra.mxu0 0.0
  %343 = vmatprep.subr.mxu0 0.0
  %344 = vmatpush1.msra.mxu0 0.0
  %345 = vmatprep.subr.mxu0 0.0
  %346 = vmatpush1.msra.mxu0 0.0
  %347 = vmatprep.subr.mxu0 0.0
  %348 = vmatpush1.msra.mxu0 0.0
  %349 = vmatprep.subr.mxu0 0.0
  %350 = vmatpush1.msra.mxu0 0.0
  %351 = vmatprep.subr.mxu0 0.0
  %352 = vmatpush1.msra.mxu0 0.0
  %353 = vmatprep.subr.mxu0 0.0
  %354 = vmatpush1.msra.mxu0 0.0
  %355 = vmatprep.subr.mxu0 0.0
  %356 = vmatpush1.msra.mxu0 0.0
  %357 = vmatprep.subr.mxu0 0.0
  %358 = vmatpush1.msra.mxu0 0.0
  %359 = vmatprep.subr.mxu0 0.0
  %360 = vmatpush1.msra.mxu0 0.0
  %361 = vmatprep.subr.mxu0 0.0
  %362 = vmatpush1.msra.mxu0 0.0
  %363 = vmatprep.subr.mxu0 0.0
  %364 = vmatpush1.msra.mxu0 0.0
  %365 = vmatprep.subr.mxu0 0.0
  %366 = vmatpush1.msra.mxu0 0.0
  %367 = vmatprep.subr.mxu0 0.0
  %368 = vmatpush1.msra.mxu0 0.0
  %369 = vmatprep.subr.mxu0 0.0
  %370 = vmatpush1.msra.mxu0 0.0
  %371 = vmatprep.subr.mxu0 0.0
  %372 = vmatpush1.msra.mxu0 0.0
  %373 = vmatprep.subr.mxu0 0.0
  %374 = vmatpush1.msra.mxu0 0.0
  %375 = vmatprep.mubr.f32.mxu0 0.0
  %376 = vmatmul.mubr.f32.gmra.mrb[0].mxu0 %v294
  %v377 = vpop.f32.mrb[0].mxu0
  %v378 = vadd.f32 0.0, %v377
  %v379 = vpop.f32.mrb[0].mxu0
  %380 = vmatprep.mubr.f32.mxu0 0.0
  %381 = vmatmul.mubr.f32.gmra.mrb[0].mxu0 %v297
  %v382 = vpop.f32.mrb[0].mxu0
  %v383 = vadd.f32 0.0, %v382
  %v384 = vpop.f32.mrb[0].mxu0
  %385 = vmatprep.mubr.f32.mxu0 0.0
  %386 = vmatmul.mubr.f32.gmra.mrb[0].mxu0 %v300
  %v387 = vpop.f32.mrb[0].mxu0
  %v388 = vadd.f32 0.0, %v387
  %v389 = vpop.f32.mrb[0].mxu0
  %390 = vmatprep.mubr.f32.mxu0 0.0
  %391 = vmatmul.mubr.f32.gmra.mrb[0].mxu0 %v303
  %v392 = vpop.f32.mrb[0].mxu0
  %v393 = vadd.f32 0.0, %v392
  %v394 = vpop.f32.mrb[0].mxu0
  %395 = vmatprep.mubr.f32.mxu0 0.0
  %396 = vmatmul.mubr.f32.gmra.mrb[0].mxu0 %v306
  %v397 = vpop.f32.mrb[0].mxu0
  %v398 = vadd.f32 0.0, %v397
  %v399 = vpop.f32.mrb[0].mxu0
  %400 = vmatprep.mubr.f32.mxu0 0.0
  %401 = vmatmul.mubr.f32.gmra.mrb[0].mxu0 %v309
  %v402 = vpop.f32.mrb[0].mxu0
  %v403 = vadd.f32 0.0, %v402
  %v404 = vpop.f32.mrb[0].mxu0
  %405 = vdwg.mxu0
  %v406 = vld [vmem:[%s1 + $0x20] sm:$0x1]
  %v407 = vld [vmem:[%s1 + $0x21] sm:$0x1]
  %v408 = vlaneseq
  %v409 = vshrl.u32 %v408, 7
  %v410 = vsub.s32 0, %v409
  %v411 = vrot.slane %v406, %v410
  %v412 = vmul.f32 %v378, %v411
  %v413 = vmul.f32 %v383, %v411
  %v414 = vmul.f32 %v388, %v411
  %v415 = vmul.f32 %v393, %v411
  %v416 = vmul.f32 %v398, %v411
  %v417 = vmul.f32 %v403, %v411
  %v418 = vlaneseq
  %v419 = vshrl.u32 %v418, 7
  %v420 = vsub.s32 0, %v419
  %v421 = vrot.slane %v407, %v420
  %v422 = vadd.f32 %v412, %v421
  %v423 = vadd.f32 %v413, %v421
  %v424 = vadd.f32 %v414, %v421
  %v425 = vadd.f32 %v415, %v421
  %v426 = vadd.f32 %v416, %v421
  %v427 = vadd.f32 %v417, %v421
  %v428 = vmax.f32 %v422, 0.0
  %v429 = vmax.f32 %v423, 0.0
  %v430 = vmax.f32 %v424, 0.0
  %v431 = vmax.f32 %v425, 0.0
  %v432 = vmax.f32 %v426, 0.0
  %v433 = vmax.f32 %v427, 0.0
  %v434 = vld [vmem:[%s2] sm:$0xff]
  %v435 = vld [vmem:[%s2 + $0x8] sm:$0xff]
  %v436 = vld [vmem:[%s2 + $0x10] sm:$0xff]
  %v437 = vld [vmem:[%s2 + $0x18] sm:$0xff]
  %v438 = vld [vmem:[%s2 + $0x20] sm:$0xff]
  %v439 = vld [vmem:[%s2 + $0x28] sm:$0xff]
  %v440 = vld [vmem:[%s2 + $0x30] sm:$0xff]
  %v441 = vld [vmem:[%s2 + $0x38] sm:$0xff]
  %v442 = vld [vmem:[%s2 + $0x40] sm:$0xff]
  %v443 = vld [vmem:[%s2 + $0x48] sm:$0xff]
  %v444 = vld [vmem:[%s2 + $0x50] sm:$0xff]
  %v445 = vld [vmem:[%s2 + $0x58] sm:$0xff]
  %vm446 = vcmask 392192
  %v448 = vsel %vm446, %v434, 0
  %v451 = vsel %vm446, %v435, 0
  %v454 = vsel %vm446, %v436, 0
  %v457 = vsel %vm446, %v437, 0
  %v460 = vsel %vm446, %v438, 0
  %v463 = vsel %vm446, %v439, 0
  %v466 = vsel %vm446, %v440, 0
  %v469 = vsel %vm446, %v441, 0
  %v472 = vsel %vm446, %v442, 0
  %v475 = vsel %vm446, %v443, 0
  %v478 = vsel %vm446, %v444, 0
  %v481 = vsel %vm446, %v445, 0
  %483 = vmatprep.subr.mxu0 0.0
  %484 = vmatpush1.msra.mxu0 %v428
  %485 = vmatprep.subr.mxu0 0.0
  %486 = vmatpush1.msra.mxu0 %v429
  %487 = vmatprep.subr.mxu0 0.0
  %488 = vmatpush1.msra.mxu0 %v430
  %489 = vmatprep.subr.mxu0 0.0
  %490 = vmatpush1.msra.mxu0 %v431
  %491 = vmatprep.subr.mxu0 0.0
  %492 = vmatpush1.msra.mxu0 %v432
  %493 = vmatprep.subr.mxu0 0.0
  %494 = vmatpush1.msra.mxu0 %v433
  %495 = vmatprep.subr.mxu0 0.0
  %496 = vmatpush1.msra.mxu0 0.0
  %497 = vmatprep.subr.mxu0 0.0
  %498 = vmatpush1.msra.mxu0 0.0
  %499 = vmatprep.subr.mxu0 0.0
  %500 = vmatpush1.msra.mxu0 0.0
  %501 = vmatprep.subr.mxu0 0.0
  %502 = vmatpush1.msra.mxu0 0.0
  %503 = vmatprep.subr.mxu0 0.0
  %504 = vmatpush1.msra.mxu0 0.0
  %505 = vmatprep.subr.mxu0 0.0
  %506 = vmatpush1.msra.mxu0 0.0
  %507 = vmatprep.subr.mxu0 0.0
  %508 = vmatpush1.msra.mxu0 0.0
  %509 = vmatprep.subr.mxu0 0.0
  %510 = vmatpush1.msra.mxu0 0.0
  %511 = vmatprep.subr.mxu0 0.0
  %512 = vmatpush1.msra.mxu0 0.0
  %513 = vmatprep.subr.mxu0 0.0
  %514 = vmatpush1.msra.mxu0 0.0
  %515 = vmatprep.subr.mxu0 0.0
  %516 = vmatpush1.msra.mxu0 0.0
  %517 = vmatprep.subr.mxu0 0.0
  %518 = vmatpush1.msra.mxu0 0.0
  %519 = vmatprep.subr.mxu0 0.0
  %520 = vmatpush1.msra.mxu0 0.0
  %521 = vmatprep.subr.mxu0 0.0
  %522 = vmatpush1.msra.mxu0 0.0
  %523 = vmatprep.subr.mxu0 0.0
  %524 = vmatpush1.msra.mxu0 0.0
  %525 = vmatprep.subr.mxu0 0.0
  %526 = vmatpush1.msra.mxu0 0.0
  %527 = vmatprep.subr.mxu0 0.0
  %528 = vmatpush1.msra.mxu0 0.0
  %529 = vmatprep.subr.mxu0 0.0
  %530 = vmatpush1.msra.mxu0 0.0
  %531 = vmatprep.subr.mxu0 0.0
  %532 = vmatpush1.msra.mxu0 0.0
  %533 = vmatprep.subr.mxu0 0.0
  %534 = vmatpush1.msra.mxu0 0.0
  %535 = vmatprep.subr.mxu0 0.0
  %536 = vmatpush1.msra.mxu0 0.0
  %537 = vmatprep.subr.mxu0 0.0
  %538 = vmatpush1.msra.mxu0 0.0
  %539 = vmatprep.subr.mxu0 0.0
  %540 = vmatpush1.msra.mxu0 0.0
  %541 = vmatprep.subr.mxu0 0.0
  %542 = vmatpush1.msra.mxu0 0.0
  %543 = vmatprep.subr.mxu0 0.0
  %544 = vmatpush1.msra.mxu0 0.0
  %545 = vmatprep.subr.mxu0 0.0
  %546 = vmatpush1.msra.mxu0 0.0
  %547 = vmatprep.mubr.f32.mxu0 0.0
  %548 = vmatmul.mubr.f32.gmra.mrb[0].mxu0 %v448
  %v549 = vpop.f32.mrb[0].mxu0
  %v550 = vadd.f32 0.0, %v549
  %v551 = vpop.f32.mrb[0].mxu0
  %552 = vmatprep.mubr.f32.mxu0 0.0
  %553 = vmatmul.mubr.f32.gmra.mrb[0].mxu0 %v451
  %v554 = vpop.f32.mrb[0].mxu0
  %v555 = vadd.f32 0.0, %v554
  %v556 = vpop.f32.mrb[0].mxu0
  %557 = vmatprep.mubr.f32.mxu0 0.0
  %558 = vmatmul.mubr.f32.gmra.mrb[0].mxu0 %v454
  %v559 = vpop.f32.mrb[0].mxu0
  %v560 = vadd.f32 0.0, %v559
  %v561 = vpop.f32.mrb[0].mxu0
  %562 = vmatprep.mubr.f32.mxu0 0.0
  %563 = vmatmul.mubr.f32.gmra.mrb[0].mxu0 %v457
  %v564 = vpop.f32.mrb[0].mxu0
  %v565 = vadd.f32 0.0, %v564
  %v566 = vpop.f32.mrb[0].mxu0
  %567 = vmatprep.mubr.f32.mxu0 0.0
  %568 = vmatmul.mubr.f32.gmra.mrb[0].mxu0 %v460
  %v569 = vpop.f32.mrb[0].mxu0
  %v570 = vadd.f32 0.0, %v569
  %v571 = vpop.f32.mrb[0].mxu0
  %572 = vmatprep.mubr.f32.mxu0 0.0
  %573 = vmatmul.mubr.f32.gmra.mrb[0].mxu0 %v463
  %v574 = vpop.f32.mrb[0].mxu0
  %v575 = vadd.f32 0.0, %v574
  %v576 = vpop.f32.mrb[0].mxu0
  %577 = vmatprep.mubr.f32.mxu0 0.0
  %578 = vmatmul.mubr.f32.gmra.mrb[0].mxu0 %v466
  %v579 = vpop.f32.mrb[0].mxu0
  %v580 = vadd.f32 0.0, %v579
  %v581 = vpop.f32.mrb[0].mxu0
  %582 = vmatprep.mubr.f32.mxu0 0.0
  %583 = vmatmul.mubr.f32.gmra.mrb[0].mxu0 %v469
  %v584 = vpop.f32.mrb[0].mxu0
  %v585 = vadd.f32 0.0, %v584
  %v586 = vpop.f32.mrb[0].mxu0
  %587 = vmatprep.mubr.f32.mxu0 0.0
  %588 = vmatmul.mubr.f32.gmra.mrb[0].mxu0 %v472
  %v589 = vpop.f32.mrb[0].mxu0
  %v590 = vadd.f32 0.0, %v589
  %v591 = vpop.f32.mrb[0].mxu0
  %592 = vmatprep.mubr.f32.mxu0 0.0
  %593 = vmatmul.mubr.f32.gmra.mrb[0].mxu0 %v475
  %v594 = vpop.f32.mrb[0].mxu0
  %v595 = vadd.f32 0.0, %v594
  %v596 = vpop.f32.mrb[0].mxu0
  %597 = vmatprep.mubr.f32.mxu0 0.0
  %598 = vmatmul.mubr.f32.gmra.mrb[0].mxu0 %v478
  %v599 = vpop.f32.mrb[0].mxu0
  %v600 = vadd.f32 0.0, %v599
  %v601 = vpop.f32.mrb[0].mxu0
  %602 = vmatprep.mubr.f32.mxu0 0.0
  %603 = vmatmul.mubr.f32.gmra.mrb[0].mxu0 %v481
  %v604 = vpop.f32.mrb[0].mxu0
  %v605 = vadd.f32 0.0, %v604
  %v606 = vpop.f32.mrb[0].mxu0
  %607 = vdwg.mxu0
  %v608 = vmax.f32 %v550, %v580
  %v609 = vmax.f32 %v555, %v585
  %v610 = vmax.f32 %v560, %v590
  %v611 = vmax.f32 %v565, %v595
  %v612 = vmax.f32 %v570, %v600
  %v613 = vmax.f32 %v575, %v605
  %614 = vst.msk [vmem:[#allocation2] sm:$0xff] %vm292, %v608
  %615 = vst.msk [vmem:[#allocation2 + $0x8] sm:$0xff] %vm292, %v609
  %616 = vst.msk [vmem:[#allocation2 + $0x10] sm:$0xff] %vm292, %v610
  %617 = vst.msk [vmem:[#allocation2 + $0x18] sm:$0xff] %vm292, %v611
  %618 = vst.msk [vmem:[#allocation2 + $0x20] sm:$0xff] %vm292, %v612
  %619 = vst.msk [vmem:[#allocation2 + $0x28] sm:$0xff] %vm292, %v613
  %v620 = vld [vmem:[#allocation2] sm:$0xff]
  %v621 = vld [vmem:[#allocation2 + $0x8] sm:$0xff]
  %v622 = vld [vmem:[#allocation2 + $0x10] sm:$0xff]
  %v623 = vld [vmem:[#allocation2 + $0x18] sm:$0xff]
  %v624 = vld [vmem:[#allocation2 + $0x20] sm:$0x3]
  %v625 = vld [vmem:[#allocation2 + $0x1] sm:$0xff]
  %v626 = vld [vmem:[#allocation2 + $0x9] sm:$0xff]
  %v627 = vld [vmem:[#allocation2 + $0x11] sm:$0xff]
  %v628 = vld [vmem:[#allocation2 + $0x19] sm:$0xff]
  %v629 = vld [vmem:[#allocation2 + $0x21] sm:$0x3]
  %v630 = vld [vmem:[#allocation2 + $0x2] sm:$0xff]
  %v631 = vld [vmem:[#allocation2 + $0xa] sm:$0xff]
  %v632 = vld [vmem:[#allocation2 + $0x12] sm:$0xff]
  %v633 = vld [vmem:[#allocation2 + $0x1a] sm:$0xff]
  %v634 = vld [vmem:[#allocation2 + $0x22] sm:$0x3]
  %v635 = vld [vmem:[#allocation2 + $0x3] sm:$0xff]
  %v636 = vld [vmem:[#allocation2 + $0xb] sm:$0xff]
  %v637 = vld [vmem:[#allocation2 + $0x13] sm:$0xff]
  %v638 = vld [vmem:[#allocation2 + $0x1b] sm:$0xff]
  %v639 = vld [vmem:[#allocation2 + $0x23] sm:$0x3]
  %v640 = vld [vmem:[#allocation2 + $0x4] sm:$0xff]
  %v641 = vld [vmem:[#allocation2 + $0xc] sm:$0xff]
  %v642 = vld [vmem:[#allocation2 + $0x14] sm:$0xff]
  %v643 = vld [vmem:[#allocation2 + $0x1c] sm:$0xff]
  %v644 = vld [vmem:[#allocation2 + $0x24] sm:$0x3]
  %v645 = vld [vmem:[#allocation2 + $0x5] sm:$0xff]
  %v646 = vld [vmem:[#allocation2 + $0xd] sm:$0xff]
  %v647 = vld [vmem:[#allocation2 + $0x15] sm:$0xff]
  %v648 = vld [vmem:[#allocation2 + $0x1d] sm:$0xff]
  %v649 = vld [vmem:[#allocation2 + $0x25] sm:$0x3]
  %v650 = vld [vmem:[#allocation2 + $0x6] sm:$0xff]
  %v651 = vld [vmem:[#allocation2 + $0xe] sm:$0xff]
  %v652 = vld [vmem:[#allocation2 + $0x16] sm:$0xff]
  %v653 = vld [vmem:[#allocation2 + $0x1e] sm:$0xff]
  %v654 = vld [vmem:[#allocation2 + $0x26] sm:$0x3]
  %v655 = vld [vmem:[#allocation2 + $0x7] sm:$0xff]
  %v656 = vld [vmem:[#allocation2 + $0xf] sm:$0xff]
  %v657 = vld [vmem:[#allocation2 + $0x17] sm:$0xff]
  %v658 = vld [vmem:[#allocation2 + $0x1f] sm:$0xff]
  %v659 = vld [vmem:[#allocation2 + $0x27] sm:$0x3]
  %665 = vrot.lane.b32.xlu0 %v625, 32
  %v666 = vpop.permute.xlu0 %665
  %667 = vrot.lane.b32.xlu0 %v626, 32
  %v668 = vpop.permute.xlu0 %667
  %669 = vrot.lane.b32.xlu0 %v627, 32
  %v670 = vpop.permute.xlu0 %669
  %671 = vrot.lane.b32.xlu0 %v628, 32
  %v672 = vpop.permute.xlu0 %671
  %673 = vrot.lane.b32.xlu0 %v629, 32
  %v674 = vpop.permute.xlu0 %673
  %685 = vrot.lane.b32.xlu0 %v630, 64
  %v686 = vpop.permute.xlu0 %685
  %687 = vrot.lane.b32.xlu0 %v631, 64
  %v688 = vpop.permute.xlu0 %687
  %689 = vrot.lane.b32.xlu0 %v632, 64
  %v690 = vpop.permute.xlu0 %689
  %691 = vrot.lane.b32.xlu0 %v633, 64
  %v692 = vpop.permute.xlu0 %691
  %693 = vrot.lane.b32.xlu0 %v634, 64
  %v694 = vpop.permute.xlu0 %693
  %705 = vrot.lane.b32.xlu0 %v635, 96
  %v706 = vpop.permute.xlu0 %705
  %707 = vrot.lane.b32.xlu0 %v636, 96
  %v708 = vpop.permute.xlu0 %707
  %709 = vrot.lane.b32.xlu0 %v637, 96
  %v710 = vpop.permute.xlu0 %709
  %711 = vrot.lane.b32.xlu0 %v638, 96
  %v712 = vpop.permute.xlu0 %711
  %713 = vrot.lane.b32.xlu0 %v639, 96
  %v714 = vpop.permute.xlu0 %713
  %725 = vrot.lane.b32.xlu0 %v645, 32
  %v726 = vpop.permute.xlu0 %725
  %727 = vrot.lane.b32.xlu0 %v646, 32
  %v728 = vpop.permute.xlu0 %727
  %729 = vrot.lane.b32.xlu0 %v647, 32
  %v730 = vpop.permute.xlu0 %729
  %731 = vrot.lane.b32.xlu0 %v648, 32
  %v732 = vpop.permute.xlu0 %731
  %733 = vrot.lane.b32.xlu0 %v649, 32
  %v734 = vpop.permute.xlu0 %733
  %745 = vrot.lane.b32.xlu0 %v650, 64
  %v746 = vpop.permute.xlu0 %745
  %747 = vrot.lane.b32.xlu0 %v651, 64
  %v748 = vpop.permute.xlu0 %747
  %749 = vrot.lane.b32.xlu0 %v652, 64
  %v750 = vpop.permute.xlu0 %749
  %751 = vrot.lane.b32.xlu0 %v653, 64
  %v752 = vpop.permute.xlu0 %751
  %753 = vrot.lane.b32.xlu0 %v654, 64
  %v754 = vpop.permute.xlu0 %753
  %765 = vrot.lane.b32.xlu0 %v655, 96
  %v766 = vpop.permute.xlu0 %765
  %767 = vrot.lane.b32.xlu0 %v656, 96
  %v768 = vpop.permute.xlu0 %767
  %769 = vrot.lane.b32.xlu0 %v657, 96
  %v770 = vpop.permute.xlu0 %769
  %771 = vrot.lane.b32.xlu0 %v658, 96
  %v772 = vpop.permute.xlu0 %771
  %773 = vrot.lane.b32.xlu0 %v659, 96
  %v774 = vpop.permute.xlu0 %773
  %v780 = vsel %vm292, %v620, %v666
  %v781 = vsel %vm292, %v621, %v668
  %v782 = vsel %vm292, %v622, %v670
  %v783 = vsel %vm292, %v623, %v672
  %v784 = vsel %vm292, %v624, %v674
  %vm785 = vcmask 523264
  %v786 = vsel %vm785, %v780, %v686
  %v787 = vsel %vm785, %v781, %v688
  %v788 = vsel %vm785, %v782, %v690
  %v789 = vsel %vm785, %v783, %v692
  %v790 = vsel %vm785, %v784, %v694
  %vm791 = vcmask 785408
  %v792 = vsel %vm791, %v786, %v706
  %v793 = vsel %vm791, %v787, %v708
  %v794 = vsel %vm791, %v788, %v710
  %v795 = vsel %vm791, %v789, %v712
  %v796 = vsel %vm791, %v790, %v714
  %v797 = vsel %vm292, %v640, %v726
  %v798 = vsel %vm292, %v641, %v728
  %v799 = vsel %vm292, %v642, %v730
  %v800 = vsel %vm292, %v643, %v732
  %v801 = vsel %vm292, %v644, %v734
  %v802 = vsel %vm785, %v797, %v746
  %v803 = vsel %vm785, %v798, %v748
  %v804 = vsel %vm785, %v799, %v750
  %v805 = vsel %vm785, %v800, %v752
  %v806 = vsel %vm785, %v801, %v754
  %v807 = vsel %vm791, %v802, %v766
  %v808 = vsel %vm791, %v803, %v768
  %v809 = vsel %vm791, %v804, %v770
  %v810 = vsel %vm791, %v805, %v772
  %v811 = vsel %vm791, %v806, %v774
  %v812 = vpack.c.bf16 %v793, %v792
  %v813 = vpack.c.bf16 %v808, %v807
  %v814 = vpack.c.bf16 %v795, %v794
  %v815 = vpack.c.bf16 %v810, %v809
  %v816 = vpack.c.bf16 %v796, %v796
  %v817 = vpack.c.bf16 %v811, %v811
  %v818 = vld [vmem:[%s3] sm:$0xf]
  %v819 = vld [vmem:[%s3 + $0x4] sm:$0xf]
  %v820 = vld [vmem:[%s3 + $0x8] sm:$0xf]
  %v821 = vld [vmem:[%s3 + $0xc] sm:$0xf]
  %v822 = vld [vmem:[%s3 + $0x10] sm:$0xf]
  %v823 = vld [vmem:[%s3 + $0x14] sm:$0xf]
  %v824 = vld [vmem:[%s3 + $0x18] sm:$0xf]
  %v825 = vld [vmem:[%s3 + $0x1c] sm:$0xf]
  %v826 = vld [vmem:[%s3 + $0x20] sm:$0xf]
  %v827 = vld [vmem:[%s3 + $0x24] sm:$0xf]
  %v828 = vld [vmem:[%s3 + $0x28] sm:$0xf]
  %v829 = vld [vmem:[%s3 + $0x2c] sm:$0xf]
  %v830 = vld [vmem:[%s3 + $0x30] sm:$0xf]
  %v831 = vld [vmem:[%s3 + $0x34] sm:$0xf]
  %v832 = vld [vmem:[%s3 + $0x38] sm:$0xf]
  %v833 = vld [vmem:[%s3 + $0x3c] sm:$0xf]
  %v834 = vld [vmem:[%s3 + $0x40] sm:$0xf]
  %v835 = vld [vmem:[%s3 + $0x44] sm:$0xf]
  %v836 = vld [vmem:[%s3 + $0x48] sm:$0xf]
  %v837 = vld [vmem:[%s3 + $0x4c] sm:$0xf]
  %v838 = vld [vmem:[%s3 + $0x50] sm:$0xf]
  %v839 = vld [vmem:[%s3 + $0x54] sm:$0xf]
  %v840 = vld [vmem:[%s3 + $0x58] sm:$0xf]
  %v841 = vld [vmem:[%s3 + $0x5c] sm:$0xf]
  %v842 = vld [vmem:[%s3 + $0x60] sm:$0xf]
  %v843 = vld [vmem:[%s3 + $0x64] sm:$0xf]
  %v844 = vld [vmem:[%s3 + $0x68] sm:$0xf]
  %v845 = vld [vmem:[%s3 + $0x6c] sm:$0xf]
  %v846 = vld [vmem:[%s3 + $0x70] sm:$0xf]
  %v847 = vld [vmem:[%s3 + $0x74] sm:$0xf]
  %v848 = vld [vmem:[%s3 + $0x78] sm:$0xf]
  %v849 = vld [vmem:[%s3 + $0x7c] sm:$0xf]
  %v882 = vunpack.c.l.b16 %v818
  %v883 = vunpack.c.l.b16 %v819
  %v884 = vunpack.c.l.b16 %v820
  %v885 = vunpack.c.l.b16 %v821
  %v886 = vunpack.c.l.b16 %v822
  %v887 = vunpack.c.l.b16 %v823
  %v888 = vunpack.c.l.b16 %v824
  %v889 = vunpack.c.l.b16 %v825
  %v890 = vunpack.c.l.b16 %v826
  %v891 = vunpack.c.l.b16 %v827
  %v892 = vunpack.c.l.b16 %v828
  %v893 = vunpack.c.l.b16 %v829
  %v894 = vunpack.c.l.b16 %v830
  %v895 = vunpack.c.l.b16 %v831
  %v896 = vunpack.c.l.b16 %v832
  %v897 = vunpack.c.l.b16 %v833
  %v898 = vunpack.c.l.b16 %v834
  %v899 = vunpack.c.l.b16 %v835
  %v900 = vunpack.c.l.b16 %v836
  %v901 = vunpack.c.l.b16 %v837
  %v902 = vunpack.c.l.b16 %v838
  %v903 = vunpack.c.l.b16 %v839
  %v904 = vunpack.c.l.b16 %v840
  %v905 = vunpack.c.l.b16 %v841
  %v906 = vunpack.c.l.b16 %v842
  %v907 = vunpack.c.l.b16 %v843
  %v908 = vunpack.c.l.b16 %v844
  %v909 = vunpack.c.l.b16 %v845
  %v910 = vunpack.c.l.b16 %v846
  %v911 = vunpack.c.l.b16 %v847
  %v912 = vunpack.c.l.b16 %v848
  %v913 = vunpack.c.l.b16 %v849
  %v914 = vpack.c.b16 %v883, %v882
  %v915 = vpack.c.b16 %v885, %v884
  %v916 = vpack.c.b16 %v887, %v886
  %v917 = vpack.c.b16 %v889, %v888
  %v918 = vpack.c.b16 %v891, %v890
  %v919 = vpack.c.b16 %v893, %v892
  %v920 = vpack.c.b16 %v895, %v894
  %v921 = vpack.c.b16 %v897, %v896
  %v922 = vpack.c.b16 %v899, %v898
  %v923 = vpack.c.b16 %v901, %v900
  %v924 = vpack.c.b16 %v903, %v902
  %v925 = vpack.c.b16 %v905, %v904
  %v926 = vpack.c.b16 %v907, %v906
  %v927 = vpack.c.b16 %v909, %v908
  %v928 = vpack.c.b16 %v911, %v910
  %v929 = vpack.c.b16 %v913, %v912
  %946 = vmatprep.subr.bf16.mxu0 0
  %947 = vmatpush1.bf16.msra.mxu0 %v914
  %948 = vmatprep.subr.bf16.mxu0 0
  %949 = vmatpush1.bf16.msra.mxu0 %v915
  %950 = vmatprep.subr.bf16.mxu0 0
  %951 = vmatpush1.bf16.msra.mxu0 %v916
  %952 = vmatprep.subr.bf16.mxu0 0
  %953 = vmatpush1.bf16.msra.mxu0 %v917
  %954 = vmatprep.subr.bf16.mxu0 0
  %955 = vmatpush1.bf16.msra.mxu0 %v918
  %956 = vmatprep.subr.bf16.mxu0 0
  %957 = vmatpush1.bf16.msra.mxu0 %v919
  %958 = vmatprep.subr.bf16.mxu0 0
  %959 = vmatpush1.bf16.msra.mxu0 %v920
  %960 = vmatprep.subr.bf16.mxu0 0
  %961 = vmatpush1.bf16.msra.mxu0 %v921
  %962 = vmatprep.subr.bf16.mxu0 0
  %963 = vmatpush1.bf16.msra.mxu0 %v922
  %964 = vmatprep.subr.bf16.mxu0 0
  %965 = vmatpush1.bf16.msra.mxu0 %v923
  %966 = vmatprep.subr.bf16.mxu0 0
  %967 = vmatpush1.bf16.msra.mxu0 %v924
  %968 = vmatprep.subr.bf16.mxu0 0
  %969 = vmatpush1.bf16.msra.mxu0 %v925
  %970 = vmatprep.subr.bf16.mxu0 0
  %971 = vmatpush1.bf16.msra.mxu0 %v926
  %972 = vmatprep.subr.bf16.mxu0 0
  %973 = vmatpush1.bf16.msra.mxu0 %v927
  %974 = vmatprep.subr.bf16.mxu0 0
  %975 = vmatpush1.bf16.msra.mxu0 %v928
  %976 = vmatprep.subr.bf16.mxu0 0
  %977 = vmatpush1.bf16.msra.mxu0 %v929
  %978 = vmatprep.mubr.bf16.mxu0 %v813
  %979 = vmatmul.mubr.bf16.gmra.mrb[0].mxu0 %v812
  %v980 = vpop.f32.mrb[0].mxu0
  %v981 = vadd.f32 0.0, %v980
  %v982 = vpop.f32.mrb[0].mxu0
  %v983 = vpop.f32.mrb[0].mxu0
  %v984 = vadd.f32 0.0, %v983
  %v985 = vpop.f32.mrb[0].mxu0
  %986 = vmatprep.mubr.bf16.mxu0 %v815
  %987 = vmatmul.mubr.bf16.gmra.mrb[0].mxu0 %v814
  %v988 = vpop.f32.mrb[0].mxu0
  %v989 = vadd.f32 0.0, %v988
  %v990 = vpop.f32.mrb[0].mxu0
  %v991 = vpop.f32.mrb[0].mxu0
  %v992 = vadd.f32 0.0, %v991
  %v993 = vpop.f32.mrb[0].mxu0
  %994 = vmatprep.mubr.bf16.mxu0 %v817
  %995 = vmatmul.mubr.bf16.gmra.mrb[0].mxu0 %v816
  %v996 = vpop.f32.mrb[0].mxu0
  %v997 = vadd.f32 0.0, %v996
  %v998 = vpop.f32.mrb[0].mxu0
  %v999 = vpop.f32.mrb[0].mxu0
  %v1000 = vpop.f32.mrb[0].mxu0
  %1001 = vdwg.mxu0
  %v1002 = vld [vmem:[%s1 + $0x22] sm:$0x1]
  %v1003 = vld [vmem:[%s1 + $0x23] sm:$0x1]
  %v1004 = vlaneseq
  %v1005 = vshrl.u32 %v1004, 7
  %v1006 = vsub.s32 0, %v1005
  %v1007 = vrot.slane %v1002, %v1006
  %v1008 = vmul.f32 %v981, %v1007
  %v1009 = vmul.f32 %v984, %v1007
  %v1010 = vmul.f32 %v989, %v1007
  %v1011 = vmul.f32 %v992, %v1007
  %v1012 = vmul.f32 %v997, %v1007
  %v1013 = vlaneseq
  %v1014 = vshrl.u32 %v1013, 7
  %v1015 = vsub.s32 0, %v1014
  %v1016 = vrot.slane %v1003, %v1015
  %v1017 = vadd.f32 %v1008, %v1016
  %v1018 = vadd.f32 %v1009, %v1016
  %v1019 = vadd.f32 %v1010, %v1016
  %v1020 = vadd.f32 %v1011, %v1016
  %v1021 = vadd.f32 %v1012, %v1016
  %v1022 = vmax.f32 %v1017, 0.0
  %v1023 = vmax.f32 %v1018, 0.0
  %v1024 = vmax.f32 %v1019, 0.0
  %v1025 = vmax.f32 %v1020, 0.0
  %v1026 = vmax.f32 %v1021, 0.0
  %v1027 = vld [vmem:[%s2 + $0x60] sm:$0xff]
  %v1028 = vld [vmem:[%s2 + $0x68] sm:$0xff]
  %v1029 = vld [vmem:[%s2 + $0x70] sm:$0xff]
  %v1030 = vld [vmem:[%s2 + $0x78] sm:$0xff]
  %v1031 = vld [vmem:[%s2 + $0x80] sm:$0xff]
  %v1032 = vld [vmem:[%s2 + $0x88] sm:$0xff]
  %v1033 = vld [vmem:[%s2 + $0x90] sm:$0xff]
  %v1034 = vld [vmem:[%s2 + $0x98] sm:$0xff]
  %v1035 = vld [vmem:[%s2 + $0xa0] sm:$0xff]
  %v1036 = vld [vmem:[%s2 + $0xa8] sm:$0xff]
  %vm1037 = vcmask 277504
  %v1039 = vsel %vm1037, %v1027, 0
  %v1042 = vsel %vm1037, %v1028, 0
  %v1045 = vsel %vm1037, %v1029, 0
  %v1048 = vsel %vm1037, %v1030, 0
  %v1051 = vsel %vm1037, %v1031, 0
  %v1054 = vsel %vm1037, %v1032, 0
  %v1057 = vsel %vm1037, %v1033, 0
  %v1060 = vsel %vm1037, %v1034, 0
  %v1063 = vsel %vm1037, %v1035, 0
  %v1066 = vsel %vm1037, %v1036, 0
  %vm1068 = vcmask 1041408
  %v1070 = vsel %vm1068, %v1026, 0
  %1072 = vmatprep.subr.mxu0 0.0
  %1073 = vmatpush1.msra.mxu0 %v1022
  %1074 = vmatprep.subr.mxu0 0.0
  %1075 = vmatpush1.msra.mxu0 %v1023
  %1076 = vmatprep.subr.mxu0 0.0
  %1077 = vmatpush1.msra.mxu0 %v1024
  %1078 = vmatprep.subr.mxu0 0.0
  %1079 = vmatpush1.msra.mxu0 %v1025
  %1080 = vmatprep.subr.mxu0 0.0
  %1081 = vmatpush1.msra.mxu0 %v1070
  %1082 = vmatprep.subr.mxu0 0.0
  %1083 = vmatpush1.msra.mxu0 0.0
  %1084 = vmatprep.subr.mxu0 0.0
  %1085 = vmatpush1.msra.mxu0 0.0
  %1086 = vmatprep.subr.mxu0 0.0
  %1087 = vmatpush1.msra.mxu0 0.0
  %1088 = vmatprep.subr.mxu0 0.0
  %1089 = vmatpush1.msra.mxu0 0.0
  %1090 = vmatprep.subr.mxu0 0.0
  %1091 = vmatpush1.msra.mxu0 0.0
  %1092 = vmatprep.subr.mxu0 0.0
  %1093 = vmatpush1.msra.mxu0 0.0
  %1094 = vmatprep.subr.mxu0 0.0
  %1095 = vmatpush1.msra.mxu0 0.0
  %1096 = vmatprep.subr.mxu0 0.0
  %1097 = vmatpush1.msra.mxu0 0.0
  %1098 = vmatprep.subr.mxu0 0.0
  %1099 = vmatpush1.msra.mxu0 0.0
  %1100 = vmatprep.subr.mxu0 0.0
  %1101 = vmatpush1.msra.mxu0 0.0
  %1102 = vmatprep.subr.mxu0 0.0
  %1103 = vmatpush1.msra.mxu0 0.0
  %1104 = vmatprep.subr.mxu0 0.0
  %1105 = vmatpush1.msra.mxu0 0.0
  %1106 = vmatprep.subr.mxu0 0.0
  %1107 = vmatpush1.msra.mxu0 0.0
  %1108 = vmatprep.subr.mxu0 0.0
  %1109 = vmatpush1.msra.mxu0 0.0
  %1110 = vmatprep.subr.mxu0 0.0
  %1111 = vmatpush1.msra.mxu0 0.0
  %1112 = vmatprep.subr.mxu0 0.0
  %1113 = vmatpush1.msra.mxu0 0.0
  %1114 = vmatprep.subr.mxu0 0.0
  %1115 = vmatpush1.msra.mxu0 0.0
  %1116 = vmatprep.subr.mxu0 0.0
  %1117 = vmatpush1.msra.mxu0 0.0
  %1118 = vmatprep.subr.mxu0 0.0
  %1119 = vmatpush1.msra.mxu0 0.0
  %1120 = vmatprep.subr.mxu0 0.0
  %1121 = vmatpush1.msra.mxu0 0.0
  %1122 = vmatprep.subr.mxu0 0.0
  %1123 = vmatpush1.msra.mxu0 0.0
  %1124 = vmatprep.subr.mxu0 0.0
  %1125 = vmatpush1.msra.mxu0 0.0
  %1126 = vmatprep.subr.mxu0 0.0
  %1127 = vmatpush1.msra.mxu0 0.0
  %1128 = vmatprep.subr.mxu0 0.0
  %1129 = vmatpush1.msra.mxu0 0.0
  %1130 = vmatprep.subr.mxu0 0.0
  %1131 = vmatpush1.msra.mxu0 0.0
  %1132 = vmatprep.subr.mxu0 0.0
  %1133 = vmatpush1.msra.mxu0 0.0
  %1134 = vmatprep.subr.mxu0 0.0
  %1135 = vmatpush1.msra.mxu0 0.0
  %1136 = vmatprep.mubr.f32.mxu0 0.0
  %1137 = vmatmul.mubr.f32.gmra.mrb[0].mxu0 %v1039
  %v1138 = vpop.f32.mrb[0].mxu0
  %v1139 = vadd.f32 0.0, %v1138
  %v1140 = vpop.f32.mrb[0].mxu0
  %1141 = vmatprep.mubr.f32.mxu0 0.0
  %1142 = vmatmul.mubr.f32.gmra.mrb[0].mxu0 %v1042
  %v1143 = vpop.f32.mrb[0].mxu0
  %v1144 = vadd.f32 0.0, %v1143
  %v1145 = vpop.f32.mrb[0].mxu0
  %1146 = vmatprep.mubr.f32.mxu0 0.0
  %1147 = vmatmul.mubr.f32.gmra.mrb[0].mxu0 %v1045
  %v1148 = vpop.f32.mrb[0].mxu0
  %v1149 = vadd.f32 0.0, %v1148
  %v1150 = vpop.f32.mrb[0].mxu0
  %1151 = vmatprep.mubr.f32.mxu0 0.0
  %1152 = vmatmul.mubr.f32.gmra.mrb[0].mxu0 %v1048
  %v1153 = vpop.f32.mrb[0].mxu0
  %v1154 = vadd.f32 0.0, %v1153
  %v1155 = vpop.f32.mrb[0].mxu0
  %1156 = vmatprep.mubr.f32.mxu0 0.0
  %1157 = vmatmul.mubr.f32.gmra.mrb[0].mxu0 %v1051
  %v1158 = vpop.f32.mrb[0].mxu0
  %v1159 = vadd.f32 0.0, %v1158
  %v1160 = vpop.f32.mrb[0].mxu0
  %1161 = vmatprep.mubr.f32.mxu0 0.0
  %1162 = vmatmul.mubr.f32.gmra.mrb[0].mxu0 %v1054
  %v1163 = vpop.f32.mrb[0].mxu0
  %v1164 = vadd.f32 0.0, %v1163
  %v1165 = vpop.f32.mrb[0].mxu0
  %1166 = vmatprep.mubr.f32.mxu0 0.0
  %1167 = vmatmul.mubr.f32.gmra.mrb[0].mxu0 %v1057
  %v1168 = vpop.f32.mrb[0].mxu0
  %v1169 = vadd.f32 0.0, %v1168
  %v1170 = vpop.f32.mrb[0].mxu0
  %1171 = vmatprep.mubr.f32.mxu0 0.0
  %1172 = vmatmul.mubr.f32.gmra.mrb[0].mxu0 %v1060
  %v1173 = vpop.f32.mrb[0].mxu0
  %v1174 = vadd.f32 0.0, %v1173
  %v1175 = vpop.f32.mrb[0].mxu0
  %1176 = vmatprep.mubr.f32.mxu0 0.0
  %1177 = vmatmul.mubr.f32.gmra.mrb[0].mxu0 %v1063
  %v1178 = vpop.f32.mrb[0].mxu0
  %v1179 = vadd.f32 0.0, %v1178
  %v1180 = vpop.f32.mrb[0].mxu0
  %1181 = vmatprep.mubr.f32.mxu0 0.0
  %1182 = vmatmul.mubr.f32.gmra.mrb[0].mxu0 %v1066
  %v1183 = vpop.f32.mrb[0].mxu0
  %v1184 = vadd.f32 0.0, %v1183
  %v1185 = vpop.f32.mrb[0].mxu0
  %1186 = vdwg.mxu0
  %v1187 = vmax.f32 %v1139, %v1164
  %v1188 = vmax.f32 %v1144, %v1169
  %v1189 = vmax.f32 %v1149, %v1174
  %v1190 = vmax.f32 %v1154, %v1179
  %v1191 = vmax.f32 %v1159, %v1184
  %1192 = vst.msk [vmem:[#allocation3] sm:$0xff] %vm785, %v1187
  %1193 = vst.msk [vmem:[#allocation3 + $0x8] sm:$0xff] %vm785, %v1188
  %1194 = vst.msk [vmem:[#allocation3 + $0x10] sm:$0xff] %vm785, %v1189
  %1195 = vst.msk [vmem:[#allocation3 + $0x18] sm:$0xff] %vm785, %v1190
  %1196 = vst.msk [vmem:[#allocation3 + $0x20] sm:$0xff] %vm785, %v1191
  %v1197 = vld [vmem:[#allocation3] sm:$0xff]
  %v1198 = vld [vmem:[#allocation3 + $0x8] sm:$0xff]
  %v1199 = vld [vmem:[#allocation3 + $0x10] sm:$0xff]
  %v1200 = vld [vmem:[#allocation3 + $0x18] sm:$0xf]
  %v1201 = vld [vmem:[#allocation3 + $0x1] sm:$0xff]
  %v1202 = vld [vmem:[#allocation3 + $0x9] sm:$0xff]
  %v1203 = vld [vmem:[#allocation3 + $0x11] sm:$0xff]
  %v1204 = vld [vmem:[#allocation3 + $0x19] sm:$0xf]
  %v1205 = vld [vmem:[#allocation3 + $0x2] sm:$0xff]
  %v1206 = vld [vmem:[#allocation3 + $0xa] sm:$0xff]
  %v1207 = vld [vmem:[#allocation3 + $0x12] sm:$0xff]
  %v1208 = vld [vmem:[#allocation3 + $0x1a] sm:$0xf]
  %v1209 = vld [vmem:[#allocation3 + $0x3] sm:$0xff]
  %v1210 = vld [vmem:[#allocation3 + $0xb] sm:$0xff]
  %v1211 = vld [vmem:[#allocation3 + $0x13] sm:$0xff]
  %v1212 = vld [vmem:[#allocation3 + $0x1b] sm:$0xf]
  %v1213 = vld [vmem:[#allocation3 + $0x4] sm:$0xff]
  %v1214 = vld [vmem:[#allocation3 + $0xc] sm:$0xff]
  %v1215 = vld [vmem:[#allocation3 + $0x14] sm:$0xff]
  %v1216 = vld [vmem:[#allocation3 + $0x1c] sm:$0xf]
  %v1217 = vld [vmem:[#allocation3 + $0x5] sm:$0xff]
  %v1218 = vld [vmem:[#allocation3 + $0xd] sm:$0xff]
  %v1219 = vld [vmem:[#allocation3 + $0x15] sm:$0xff]
  %v1220 = vld [vmem:[#allocation3 + $0x1d] sm:$0xf]
  %v1221 = vld [vmem:[#allocation3 + $0x6] sm:$0xff]
  %v1222 = vld [vmem:[#allocation3 + $0xe] sm:$0xff]
  %v1223 = vld [vmem:[#allocation3 + $0x16] sm:$0xff]
  %v1224 = vld [vmem:[#allocation3 + $0x1e] sm:$0xf]
  %v1225 = vld [vmem:[#allocation3 + $0x7] sm:$0xff]
  %v1226 = vld [vmem:[#allocation3 + $0xf] sm:$0xff]
  %v1227 = vld [vmem:[#allocation3 + $0x17] sm:$0xff]
  %v1228 = vld [vmem:[#allocation3 + $0x1f] sm:$0xf]
  %1233 = vrot.lane.b32.xlu0 %v1201, 64
  %v1234 = vpop.permute.xlu0 %1233
  %1235 = vrot.lane.b32.xlu0 %v1202, 64
  %v1236 = vpop.permute.xlu0 %1235
  %1237 = vrot.lane.b32.xlu0 %v1203, 64
  %v1238 = vpop.permute.xlu0 %1237
  %1239 = vrot.lane.b32.xlu0 %v1204, 64
  %v1240 = vpop.permute.xlu0 %1239
  %1249 = vrot.lane.b32.xlu0 %v1209, 64
  %v1250 = vpop.permute.xlu0 %1249
  %1251 = vrot.lane.b32.xlu0 %v1210, 64
  %v1252 = vpop.permute.xlu0 %1251
  %1253 = vrot.lane.b32.xlu0 %v1211, 64
  %v1254 = vpop.permute.xlu0 %1253
  %1255 = vrot.lane.b32.xlu0 %v1212, 64
  %v1256 = vpop.permute.xlu0 %1255
  %1265 = vrot.lane.b32.xlu0 %v1217, 64
  %v1266 = vpop.permute.xlu0 %1265
  %1267 = vrot.lane.b32.xlu0 %v1218, 64
  %v1268 = vpop.permute.xlu0 %1267
  %1269 = vrot.lane.b32.xlu0 %v1219, 64
  %v1270 = vpop.permute.xlu0 %1269
  %1271 = vrot.lane.b32.xlu0 %v1220, 64
  %v1272 = vpop.permute.xlu0 %1271
  %1281 = vrot.lane.b32.xlu0 %v1225, 64
  %v1282 = vpop.permute.xlu0 %1281
  %1283 = vrot.lane.b32.xlu0 %v1226, 64
  %v1284 = vpop.permute.xlu0 %1283
  %1285 = vrot.lane.b32.xlu0 %v1227, 64
  %v1286 = vpop.permute.xlu0 %1285
  %1287 = vrot.lane.b32.xlu0 %v1228, 64
  %v1288 = vpop.permute.xlu0 %1287
  %v1293 = vsel %vm785, %v1197, %v1234
  %v1294 = vsel %vm785, %v1198, %v1236
  %v1295 = vsel %vm785, %v1199, %v1238
  %v1296 = vsel %vm785, %v1200, %v1240
  %v1297 = vsel %vm785, %v1205, %v1250
  %v1298 = vsel %vm785, %v1206, %v1252
  %v1299 = vsel %vm785, %v1207, %v1254
  %v1300 = vsel %vm785, %v1208, %v1256
  %v1301 = vsel %vm785, %v1213, %v1266
  %v1302 = vsel %vm785, %v1214, %v1268
  %v1303 = vsel %vm785, %v1215, %v1270
  %v1304 = vsel %vm785, %v1216, %v1272
  %v1305 = vsel %vm785, %v1221, %v1282
  %v1306 = vsel %vm785, %v1222, %v1284
  %v1307 = vsel %vm785, %v1223, %v1286
  %v1308 = vsel %vm785, %v1224, %v1288
  %v1309 = vpack.c.bf16 %v1294, %v1293
  %v1310 = vpack.c.bf16 %v1298, %v1297
  %v1311 = vpack.c.bf16 %v1302, %v1301
  %v1312 = vpack.c.bf16 %v1306, %v1305
  %v1313 = vpack.c.bf16 %v1296, %v1295
  %v1314 = vpack.c.bf16 %v1300, %v1299
  %v1315 = vpack.c.bf16 %v1304, %v1303
  %v1316 = vpack.c.bf16 %v1308, %v1307
  %v1317 = vld [vmem:[%s3 + $0x80] sm:$0xf]
  %v1318 = vld [vmem:[%s3 + $0x84] sm:$0xf]
  %v1319 = vld [vmem:[%s3 + $0x88] sm:$0xf]
  %v1320 = vld [vmem:[%s3 + $0x8c] sm:$0xf]
  %v1321 = vld [vmem:[%s3 + $0x90] sm:$0xf]
  %v1322 = vld [vmem:[%s3 + $0x94] sm:$0xf]
  %v1323 = vld [vmem:[%s3 + $0x98] sm:$0xf]
  %v1324 = vld [vmem:[%s3 + $0x9c] sm:$0xf]
  %v1325 = vld [vmem:[%s3 + $0xa0] sm:$0xf]
  %v1326 = vld [vmem:[%s3 + $0xa4] sm:$0xf]
  %v1327 = vld [vmem:[%s3 + $0xa8] sm:$0xf]
  %v1328 = vld [vmem:[%s3 + $0xac] sm:$0xf]
  %v1329 = vld [vmem:[%s3 + $0xb0] sm:$0xf]
  %v1330 = vld [vmem:[%s3 + $0xb4] sm:$0xf]
  %v1331 = vld [vmem:[%s3 + $0xb8] sm:$0xf]
  %v1332 = vld [vmem:[%s3 + $0xbc] sm:$0xf]
  %v1333 = vld [vmem:[%s3 + $0xc0] sm:$0xf]
  %v1334 = vld [vmem:[%s3 + $0xc4] sm:$0xf]
  %v1335 = vld [vmem:[%s3 + $0xc8] sm:$0xf]
  %v1336 = vld [vmem:[%s3 + $0xcc] sm:$0xf]
  %v1337 = vld [vmem:[%s3 + $0xd0] sm:$0xf]
  %v1338 = vld [vmem:[%s3 + $0xd4] sm:$0xf]
  %v1339 = vld [vmem:[%s3 + $0xd8] sm:$0xf]
  %v1340 = vld [vmem:[%s3 + $0xdc] sm:$0xf]
  %v1341 = vld [vmem:[%s3 + $0xe0] sm:$0xf]
  %v1342 = vld [vmem:[%s3 + $0xe4] sm:$0xf]
  %v1343 = vld [vmem:[%s3 + $0xe8] sm:$0xf]
  %v1344 = vld [vmem:[%s3 + $0xec] sm:$0xf]
  %v1345 = vld [vmem:[%s3 + $0xf0] sm:$0xf]
  %v1346 = vld [vmem:[%s3 + $0xf4] sm:$0xf]
  %v1347 = vld [vmem:[%s3 + $0xf8] sm:$0xf]
  %v1348 = vld [vmem:[%s3 + $0xfc] sm:$0xf]
  %v1349 = vld [vmem:[%s3 + $0x100] sm:$0xf]
  %v1350 = vld [vmem:[%s3 + $0x104] sm:$0xf]
  %v1351 = vld [vmem:[%s3 + $0x108] sm:$0xf]
  %v1352 = vld [vmem:[%s3 + $0x10c] sm:$0xf]
  %v1353 = vld [vmem:[%s3 + $0x110] sm:$0xf]
  %v1354 = vld [vmem:[%s3 + $0x114] sm:$0xf]
  %v1355 = vld [vmem:[%s3 + $0x118] sm:$0xf]
  %v1356 = vld [vmem:[%s3 + $0x11c] sm:$0xf]
  %v1357 = vld [vmem:[%s3 + $0x120] sm:$0xf]
  %v1358 = vld [vmem:[%s3 + $0x124] sm:$0xf]
  %v1359 = vld [vmem:[%s3 + $0x128] sm:$0xf]
  %v1360 = vld [vmem:[%s3 + $0x12c] sm:$0xf]
  %v1361 = vld [vmem:[%s3 + $0x130] sm:$0xf]
  %v1362 = vld [vmem:[%s3 + $0x134] sm:$0xf]
  %v1363 = vld [vmem:[%s3 + $0x138] sm:$0xf]
  %v1364 = vld [vmem:[%s3 + $0x13c] sm:$0xf]
  %v1365 = vld [vmem:[%s3 + $0x140] sm:$0xf]
  %v1366 = vld [vmem:[%s3 + $0x144] sm:$0xf]
  %v1367 = vld [vmem:[%s3 + $0x148] sm:$0xf]
  %v1368 = vld [vmem:[%s3 + $0x14c] sm:$0xf]
  %v1369 = vld [vmem:[%s3 + $0x150] sm:$0xf]
  %v1370 = vld [vmem:[%s3 + $0x154] sm:$0xf]
  %v1371 = vld [vmem:[%s3 + $0x158] sm:$0xf]
  %v1372 = vld [vmem:[%s3 + $0x15c] sm:$0xf]
  %v1373 = vld [vmem:[%s3 + $0x160] sm:$0xf]
  %v1374 = vld [vmem:[%s3 + $0x164] sm:$0xf]
  %v1375 = vld [vmem:[%s3 + $0x168] sm:$0xf]
  %v1376 = vld [vmem:[%s3 + $0x16c] sm:$0xf]
  %v1377 = vld [vmem:[%s3 + $0x170] sm:$0xf]
  %v1378 = vld [vmem:[%s3 + $0x174] sm:$0xf]
  %v1379 = vld [vmem:[%s3 + $0x178] sm:$0xf]
  %v1380 = vld [vmem:[%s3 + $0x17c] sm:$0xf]
  %v1445 = vunpack.c.l.b16 %v1317
  %v1446 = vunpack.c.l.b16 %v1318
  %v1447 = vunpack.c.l.b16 %v1319
  %v1448 = vunpack.c.l.b16 %v1320
  %v1449 = vunpack.c.l.b16 %v1321
  %v1450 = vunpack.c.l.b16 %v1322
  %v1451 = vunpack.c.l.b16 %v1323
  %v1452 = vunpack.c.l.b16 %v1324
  %v1453 = vunpack.c.l.b16 %v1325
  %v1454 = vunpack.c.l.b16 %v1326
  %v1455 = vunpack.c.l.b16 %v1327
  %v1456 = vunpack.c.l.b16 %v1328
  %v1457 = vunpack.c.l.b16 %v1329
  %v1458 = vunpack.c.l.b16 %v1330
  %v1459 = vunpack.c.l.b16 %v1331
  %v1460 = vunpack.c.l.b16 %v1332
  %v1461 = vunpack.c.l.b16 %v1333
  %v1462 = vunpack.c.l.b16 %v1334
  %v1463 = vunpack.c.l.b16 %v1335
  %v1464 = vunpack.c.l.b16 %v1336
  %v1465 = vunpack.c.l.b16 %v1337
  %v1466 = vunpack.c.l.b16 %v1338
  %v1467 = vunpack.c.l.b16 %v1339
  %v1468 = vunpack.c.l.b16 %v1340
  %v1469 = vunpack.c.l.b16 %v1341
  %v1470 = vunpack.c.l.b16 %v1342
  %v1471 = vunpack.c.l.b16 %v1343
  %v1472 = vunpack.c.l.b16 %v1344
  %v1473 = vunpack.c.l.b16 %v1345
  %v1474 = vunpack.c.l.b16 %v1346
  %v1475 = vunpack.c.l.b16 %v1347
  %v1476 = vunpack.c.l.b16 %v1348
  %v1477 = vunpack.c.l.b16 %v1349
  %v1478 = vunpack.c.l.b16 %v1350
  %v1479 = vunpack.c.l.b16 %v1351
  %v1480 = vunpack.c.l.b16 %v1352
  %v1481 = vunpack.c.l.b16 %v1353
  %v1482 = vunpack.c.l.b16 %v1354
  %v1483 = vunpack.c.l.b16 %v1355
  %v1484 = vunpack.c.l.b16 %v1356
  %v1485 = vunpack.c.l.b16 %v1357
  %v1486 = vunpack.c.l.b16 %v1358
  %v1487 = vunpack.c.l.b16 %v1359
  %v1488 = vunpack.c.l.b16 %v1360
  %v1489 = vunpack.c.l.b16 %v1361
  %v1490 = vunpack.c.l.b16 %v1362
  %v1491 = vunpack.c.l.b16 %v1363
  %v1492 = vunpack.c.l.b16 %v1364
  %v1493 = vunpack.c.l.b16 %v1365
  %v1494 = vunpack.c.l.b16 %v1366
  %v1495 = vunpack.c.l.b16 %v1367
  %v1496 = vunpack.c.l.b16 %v1368
  %v1497 = vunpack.c.l.b16 %v1369
  %v1498 = vunpack.c.l.b16 %v1370
  %v1499 = vunpack.c.l.b16 %v1371
  %v1500 = vunpack.c.l.b16 %v1372
  %v1501 = vunpack.c.l.b16 %v1373
  %v1502 = vunpack.c.l.b16 %v1374
  %v1503 = vunpack.c.l.b16 %v1375
  %v1504 = vunpack.c.l.b16 %v1376
  %v1505 = vunpack.c.l.b16 %v1377
  %v1506 = vunpack.c.l.b16 %v1378
  %v1507 = vunpack.c.l.b16 %v1379
  %v1508 = vunpack.c.l.b16 %v1380
  %v1509 = vpack.c.b16 %v1446, %v1445
  %v1510 = vpack.c.b16 %v1448, %v1447
  %v1511 = vpack.c.b16 %v1450, %v1449
  %v1512 = vpack.c.b16 %v1452, %v1451
  %v1513 = vpack.c.b16 %v1454, %v1453
  %v1514 = vpack.c.b16 %v1456, %v1455
  %v1515 = vpack.c.b16 %v1458, %v1457
  %v1516 = vpack.c.b16 %v1460, %v1459
  %v1517 = vpack.c.b16 %v1462, %v1461
  %v1518 = vpack.c.b16 %v1464, %v1463
  %v1519 = vpack.c.b16 %v1466, %v1465
  %v1520 = vpack.c.b16 %v1468, %v1467
  %v1521 = vpack.c.b16 %v1470, %v1469
  %v1522 = vpack.c.b16 %v1472, %v1471
  %v1523 = vpack.c.b16 %v1474, %v1473
  %v1524 = vpack.c.b16 %v1476, %v1475
  %v1525 = vpack.c.b16 %v1478, %v1477
  %v1526 = vpack.c.b16 %v1480, %v1479
  %v1527 = vpack.c.b16 %v1482, %v1481
  %v1528 = vpack.c.b16 %v1484, %v1483
  %v1529 = vpack.c.b16 %v1486, %v1485
  %v1530 = vpack.c.b16 %v1488, %v1487
  %v1531 = vpack.c.b16 %v1490, %v1489
  %v1532 = vpack.c.b16 %v1492, %v1491
  %v1533 = vpack.c.b16 %v1494, %v1493
  %v1534 = vpack.c.b16 %v1496, %v1495
  %v1535 = vpack.c.b16 %v1498, %v1497
  %v1536 = vpack.c.b16 %v1500, %v1499
  %v1537 = vpack.c.b16 %v1502, %v1501
  %v1538 = vpack.c.b16 %v1504, %v1503
  %v1539 = vpack.c.b16 %v1506, %v1505
  %v1540 = vpack.c.b16 %v1508, %v1507
  %1573 = vmatprep.subr.bf16.mxu0 0
  %1574 = vmatpush1.bf16.msra.mxu0 %v1509
  %1575 = vmatprep.subr.bf16.mxu0 0
  %1576 = vmatpush1.bf16.msra.mxu0 %v1510
  %1577 = vmatprep.subr.bf16.mxu0 0
  %1578 = vmatpush1.bf16.msra.mxu0 %v1511
  %1579 = vmatprep.subr.bf16.mxu0 0
  %1580 = vmatpush1.bf16.msra.mxu0 %v1512
  %1581 = vmatprep.subr.bf16.mxu0 0
  %1582 = vmatpush1.bf16.msra.mxu0 %v1513
  %1583 = vmatprep.subr.bf16.mxu0 0
  %1584 = vmatpush1.bf16.msra.mxu0 %v1514
  %1585 = vmatprep.subr.bf16.mxu0 0
  %1586 = vmatpush1.bf16.msra.mxu0 %v1515
  %1587 = vmatprep.subr.bf16.mxu0 0
  %1588 = vmatpush1.bf16.msra.mxu0 %v1516
  %1589 = vmatprep.subr.bf16.mxu0 0
  %1590 = vmatpush1.bf16.msra.mxu0 %v1517
  %1591 = vmatprep.subr.bf16.mxu0 0
  %1592 = vmatpush1.bf16.msra.mxu0 %v1518
  %1593 = vmatprep.subr.bf16.mxu0 0
  %1594 = vmatpush1.bf16.msra.mxu0 %v1519
  %1595 = vmatprep.subr.bf16.mxu0 0
  %1596 = vmatpush1.bf16.msra.mxu0 %v1520
  %1597 = vmatprep.subr.bf16.mxu0 0
  %1598 = vmatpush1.bf16.msra.mxu0 %v1521
  %1599 = vmatprep.subr.bf16.mxu0 0
  %1600 = vmatpush1.bf16.msra.mxu0 %v1522
  %1601 = vmatprep.subr.bf16.mxu0 0
  %1602 = vmatpush1.bf16.msra.mxu0 %v1523
  %1603 = vmatprep.subr.bf16.mxu0 0
  %1604 = vmatpush1.bf16.msra.mxu0 %v1524
  %1605 = vmatprep.mubr.bf16.mxu0 %v1310
  %1606 = vmatmul.mubr.bf16.gmra.mrb[0].mxu0 %v1309
  %v1607 = vpop.f32.mrb[0].mxu0
  %v1608 = vadd.f32 0.0, %v1607
  %v1609 = vpop.f32.mrb[0].mxu0
  %v1610 = vpop.f32.mrb[0].mxu0
  %v1611 = vadd.f32 0.0, %v1610
  %v1612 = vpop.f32.mrb[0].mxu0
  %1613 = vmatprep.mubr.bf16.mxu0 %v1314
  %1614 = vmatmul.mubr.bf16.gmra.mrb[0].mxu0 %v1313
  %v1615 = vpop.f32.mrb[0].mxu0
  %v1616 = vadd.f32 0.0, %v1615
  %v1617 = vpop.f32.mrb[0].mxu0
  %v1618 = vpop.f32.mrb[0].mxu0
  %v1619 = vadd.f32 0.0, %v1618
  %v1620 = vpop.f32.mrb[0].mxu0
  %1621 = vdwg.mxu0
  %1622 = vmatprep.subr.bf16.mxu0 0
  %1623 = vmatpush1.bf16.msra.mxu0 %v1525
  %1624 = vmatprep.subr.bf16.mxu0 0
  %1625 = vmatpush1.bf16.msra.mxu0 %v1526
  %1626 = vmatprep.subr.bf16.mxu0 0
  %1627 = vmatpush1.bf16.msra.mxu0 %v1527
  %1628 = vmatprep.subr.bf16.mxu0 0
  %1629 = vmatpush1.bf16.msra.mxu0 %v1528
  %1630 = vmatprep.subr.bf16.mxu0 0
  %1631 = vmatpush1.bf16.msra.mxu0 %v1529
  %1632 = vmatprep.subr.bf16.mxu0 0
  %1633 = vmatpush1.bf16.msra.mxu0 %v1530
  %1634 = vmatprep.subr.bf16.mxu0 0
  %1635 = vmatpush1.bf16.msra.mxu0 %v1531
  %1636 = vmatprep.subr.bf16.mxu0 0
  %1637 = vmatpush1.bf16.msra.mxu0 %v1532
  %1638 = vmatprep.subr.bf16.mxu0 0
  %1639 = vmatpush1.bf16.msra.mxu0 %v1533
  %1640 = vmatprep.subr.bf16.mxu0 0
  %1641 = vmatpush1.bf16.msra.mxu0 %v1534
  %1642 = vmatprep.subr.bf16.mxu0 0
  %1643 = vmatpush1.bf16.msra.mxu0 %v1535
  %1644 = vmatprep.subr.bf16.mxu0 0
  %1645 = vmatpush1.bf16.msra.mxu0 %v1536
  %1646 = vmatprep.subr.bf16.mxu0 0
  %1647 = vmatpush1.bf16.msra.mxu0 %v1537
  %1648 = vmatprep.subr.bf16.mxu0 0
  %1649 = vmatpush1.bf16.msra.mxu0 %v1538
  %1650 = vmatprep.subr.bf16.mxu0 0
  %1651 = vmatpush1.bf16.msra.mxu0 %v1539
  %1652 = vmatprep.subr.bf16.mxu0 0
  %1653 = vmatpush1.bf16.msra.mxu0 %v1540
  %1654 = vmatprep.mubr.bf16.mxu0 %v1312
  %1655 = vmatmul.mubr.bf16.gmra.mrb[0].mxu0 %v1311
  %v1656 = vpop.f32.mrb[0].mxu0
  %v1657 = vadd.f32 %v1608, %v1656
  %v1658 = vpop.f32.mrb[0].mxu0
  %v1659 = vpop.f32.mrb[0].mxu0
  %v1660 = vadd.f32 %v1611, %v1659
  %v1661 = vpop.f32.mrb[0].mxu0
  %1662 = vmatprep.mubr.bf16.mxu0 %v1316
  %1663 = vmatmul.mubr.bf16.gmra.mrb[0].mxu0 %v1315
  %v1664 = vpop.f32.mrb[0].mxu0
  %v1665 = vadd.f32 %v1616, %v1664
  %v1666 = vpop.f32.mrb[0].mxu0
  %v1667 = vpop.f32.mrb[0].mxu0
  %v1668 = vadd.f32 %v1619, %v1667
  %v1669 = vpop.f32.mrb[0].mxu0
  %1670 = vdwg.mxu0
  %v1671 = vld [vmem:[%s1 + $0x24] sm:$0x1]
  %v1672 = vld [vmem:[%s1 + $0x25] sm:$0x1]
  %v1673 = vlaneseq
  %v1674 = vshrl.u32 %v1673, 7
  %v1675 = vsub.s32 0, %v1674
  %v1676 = vrot.slane %v1671, %v1675
  %v1677 = vmul.f32 %v1657, %v1676
  %v1678 = vmul.f32 %v1660, %v1676
  %v1679 = vmul.f32 %v1665, %v1676
  %v1680 = vmul.f32 %v1668, %v1676
  %v1681 = vlaneseq
  %v1682 = vshrl.u32 %v1681, 7
  %v1683 = vsub.s32 0, %v1682
  %v1684 = vrot.slane %v1672, %v1683
  %v1685 = vadd.f32 %v1677, %v1684
  %v1686 = vadd.f32 %v1678, %v1684
  %v1687 = vadd.f32 %v1679, %v1684
  %v1688 = vadd.f32 %v1680, %v1684
  %v1689 = vmax.f32 %v1685, 0.0
  %v1690 = vmax.f32 %v1686, 0.0
  %v1691 = vmax.f32 %v1687, 0.0
  %v1692 = vmax.f32 %v1688, 0.0
  %v1693 = vld [vmem:[%s2 + $0xb0] sm:$0xff]
  %v1694 = vld [vmem:[%s2 + $0xb8] sm:$0xff]
  %v1695 = vld [vmem:[%s2 + $0xc0] sm:$0xff]
  %v1696 = vld [vmem:[%s2 + $0xc8] sm:$0xff]
  %v1697 = vld [vmem:[%s2 + $0xd0] sm:$0xff]
  %v1698 = vld [vmem:[%s2 + $0xd8] sm:$0xff]
  %v1699 = vld [vmem:[%s2 + $0xe0] sm:$0xff]
  %v1700 = vld [vmem:[%s2 + $0xe8] sm:$0xff]
  %v1702 = vsel %vm281, %v1693, 0
  %v1705 = vsel %vm281, %v1694, 0
  %v1708 = vsel %vm281, %v1695, 0
  %v1711 = vsel %vm281, %v1696, 0
  %v1714 = vsel %vm281, %v1697, 0
  %v1717 = vsel %vm281, %v1698, 0
  %v1720 = vsel %vm281, %v1699, 0
  %v1723 = vsel %vm281, %v1700, 0
  %vm1725 = vcmask 1043456
  %v1727 = vsel %vm1725, %v1692, 0
  %1729 = vmatprep.subr.mxu0 0.0
  %1730 = vmatpush1.msra.mxu0 %v1689
  %1731 = vmatprep.subr.mxu0 0.0
  %1732 = vmatpush1.msra.mxu0 %v1690
  %1733 = vmatprep.subr.mxu0 0.0
  %1734 = vmatpush1.msra.mxu0 %v1691
  %1735 = vmatprep.subr.mxu0 0.0
  %1736 = vmatpush1.msra.mxu0 %v1727
  %1737 = vmatprep.subr.mxu0 0.0
  %1738 = vmatpush1.msra.mxu0 0.0
  %1739 = vmatprep.subr.mxu0 0.0
  %1740 = vmatpush1.msra.mxu0 0.0
  %1741 = vmatprep.subr.mxu0 0.0
  %1742 = vmatpush1.msra.mxu0 0.0
  %1743 = vmatprep.subr.mxu0 0.0
  %1744 = vmatpush1.msra.mxu0 0.0
  %1745 = vmatprep.subr.mxu0 0.0
  %1746 = vmatpush1.msra.mxu0 0.0
  %1747 = vmatprep.subr.mxu0 0.0
  %1748 = vmatpush1.msra.mxu0 0.0
  %1749 = vmatprep.subr.mxu0 0.0
  %1750 = vmatpush1.msra.mxu0 0.0
  %1751 = vmatprep.subr.mxu0 0.0
  %1752 = vmatpush1.msra.mxu0 0.0
  %1753 = vmatprep.subr.mxu0 0.0
  %1754 = vmatpush1.msra.mxu0 0.0
  %1755 = vmatprep.subr.mxu0 0.0
  %1756 = vmatpush1.msra.mxu0 0.0
  %1757 = vmatprep.subr.mxu0 0.0
  %1758 = vmatpush1.msra.mxu0 0.0
  %1759 = vmatprep.subr.mxu0 0.0
  %1760 = vmatpush1.msra.mxu0 0.0
  %1761 = vmatprep.subr.mxu0 0.0
  %1762 = vmatpush1.msra.mxu0 0.0
  %1763 = vmatprep.subr.mxu0 0.0
  %1764 = vmatpush1.msra.mxu0 0.0
  %1765 = vmatprep.subr.mxu0 0.0
  %1766 = vmatpush1.msra.mxu0 0.0
  %1767 = vmatprep.subr.mxu0 0.0
  %1768 = vmatpush1.msra.mxu0 0.0
  %1769 = vmatprep.subr.mxu0 0.0
  %1770 = vmatpush1.msra.mxu0 0.0
  %1771 = vmatprep.subr.mxu0 0.0
  %1772 = vmatpush1.msra.mxu0 0.0
  %1773 = vmatprep.subr.mxu0 0.0
  %1774 = vmatpush1.msra.mxu0 0.0
  %1775 = vmatprep.subr.mxu0 0.0
  %1776 = vmatpush1.msra.mxu0 0.0
  %1777 = vmatprep.subr.mxu0 0.0
  %1778 = vmatpush1.msra.mxu0 0.0
  %1779 = vmatprep.subr.mxu0 0.0
  %1780 = vmatpush1.msra.mxu0 0.0
  %1781 = vmatprep.subr.mxu0 0.0
  %1782 = vmatpush1.msra.mxu0 0.0
  %1783 = vmatprep.subr.mxu0 0.0
  %1784 = vmatpush1.msra.mxu0 0.0
  %1785 = vmatprep.subr.mxu0 0.0
  %1786 = vmatpush1.msra.mxu0 0.0
  %1787 = vmatprep.subr.mxu0 0.0
  %1788 = vmatpush1.msra.mxu0 0.0
  %1789 = vmatprep.subr.mxu0 0.0
  %1790 = vmatpush1.msra.mxu0 0.0
  %1791 = vmatprep.subr.mxu0 0.0
  %1792 = vmatpush1.msra.mxu0 0.0
  %1793 = vmatprep.mubr.f32.mxu0 0.0
  %1794 = vmatmul.mubr.f32.gmra.mrb[0].mxu0 %v1702
  %v1795 = vpop.f32.mrb[0].mxu0
  %v1796 = vadd.f32 0.0, %v1795
  %v1797 = vpop.f32.mrb[0].mxu0
  %1798 = vmatprep.mubr.f32.mxu0 0.0
  %1799 = vmatmul.mubr.f32.gmra.mrb[0].mxu0 %v1705
  %v1800 = vpop.f32.mrb[0].mxu0
  %v1801 = vadd.f32 0.0, %v1800
  %v1802 = vpop.f32.mrb[0].mxu0
  %1803 = vmatprep.mubr.f32.mxu0 0.0
  %1804 = vmatmul.mubr.f32.gmra.mrb[0].mxu0 %v1708
  %v1805 = vpop.f32.mrb[0].mxu0
  %v1806 = vadd.f32 0.0, %v1805
  %v1807 = vpop.f32.mrb[0].mxu0
  %1808 = vmatprep.mubr.f32.mxu0 0.0
  %1809 = vmatmul.mubr.f32.gmra.mrb[0].mxu0 %v1711
  %v1810 = vpop.f32.mrb[0].mxu0
  %v1811 = vadd.f32 0.0, %v1810
  %v1812 = vpop.f32.mrb[0].mxu0
  %1813 = vmatprep.mubr.f32.mxu0 0.0
  %1814 = vmatmul.mubr.f32.gmra.mrb[0].mxu0 %v1714
  %v1815 = vpop.f32.mrb[0].mxu0
  %v1816 = vadd.f32 0.0, %v1815
  %v1817 = vpop.f32.mrb[0].mxu0
  %1818 = vmatprep.mubr.f32.mxu0 0.0
  %1819 = vmatmul.mubr.f32.gmra.mrb[0].mxu0 %v1717
  %v1820 = vpop.f32.mrb[0].mxu0
  %v1821 = vadd.f32 0.0, %v1820
  %v1822 = vpop.f32.mrb[0].mxu0
  %1823 = vmatprep.mubr.f32.mxu0 0.0
  %1824 = vmatmul.mubr.f32.gmra.mrb[0].mxu0 %v1720
  %v1825 = vpop.f32.mrb[0].mxu0
  %v1826 = vadd.f32 0.0, %v1825
  %v1827 = vpop.f32.mrb[0].mxu0
  %1828 = vmatprep.mubr.f32.mxu0 0.0
  %1829 = vmatmul.mubr.f32.gmra.mrb[0].mxu0 %v1723
  %v1830 = vpop.f32.mrb[0].mxu0
  %v1831 = vadd.f32 0.0, %v1830
  %v1832 = vpop.f32.mrb[0].mxu0
  %1833 = vdwg.mxu0
  %v1834 = vmax.f32 %v1796, %v1816
  %v1835 = vmax.f32 %v1801, %v1821
  %v1836 = vmax.f32 %v1806, %v1826
  %v1837 = vmax.f32 %v1811, %v1831
  %1838 = vst [vmem:[%s6] sm:$0xff] %v1834
  %1839 = vst [vmem:[%s6 + $0x8] sm:$0xff] %v1835
  %1840 = vst [vmem:[%s6 + $0x10] sm:$0xff] %v1836
  %1841 = vst [vmem:[%s6 + $0x18] sm:$0xff] %v1837
  %v1842 = vld [vmem:[%s4] sm:$0xff]
  %v1843 = vld [vmem:[%s4 + $0x8] sm:$0xff]
  %v1844 = vld [vmem:[%s4 + $0x10] sm:$0xff]
  %v1845 = vld [vmem:[%s4 + $0x18] sm:$0xff]
  %s1846 = scalar_lea.vmem %s4, 32
  %v1847 = vld [vmem:[%s1846] sm:$0xff]
  %v1848 = vld [vmem:[%s1846 + $0x8] sm:$0xff]
  %v1849 = vld [vmem:[%s1846 + $0x10] sm:$0xff]
  %v1850 = vld [vmem:[%s1846 + $0x18] sm:$0xff]
  %v1852 = vsel %vm292, %v1835, 0
  %1854 = vmatprep.subr.mxu0 0.0
  %1855 = vmatpush1.msra.mxu0 %v1847
  %1856 = vmatprep.subr.mxu0 0.0
  %1857 = vmatpush1.msra.mxu0 %v1848
  %1858 = vmatprep.subr.mxu0 0.0
  %1859 = vmatpush1.msra.mxu0 %v1849
  %1860 = vmatprep.subr.mxu0 0.0
  %1861 = vmatpush1.msra.mxu0 %v1850
  %1862 = vmatprep.subr.mxu0 0.0
  %1863 = vmatpush1.msra.mxu0 0.0
  %1864 = vmatprep.subr.mxu0 0.0
  %1865 = vmatpush1.msra.mxu0 0.0
  %1866 = vmatprep.subr.mxu0 0.0
  %1867 = vmatpush1.msra.mxu0 0.0
  %1868 = vmatprep.subr.mxu0 0.0
  %1869 = vmatpush1.msra.mxu0 0.0
  %1870 = vmatprep.subr.mxu0 0.0
  %1871 = vmatpush1.msra.mxu0 0.0
  %1872 = vmatprep.subr.mxu0 0.0
  %1873 = vmatpush1.msra.mxu0 0.0
  %1874 = vmatprep.subr.mxu0 0.0
  %1875 = vmatpush1.msra.mxu0 0.0
  %1876 = vmatprep.subr.mxu0 0.0
  %1877 = vmatpush1.msra.mxu0 0.0
  %1878 = vmatprep.subr.mxu0 0.0
  %1879 = vmatpush1.msra.mxu0 0.0
  %1880 = vmatprep.subr.mxu0 0.0
  %1881 = vmatpush1.msra.mxu0 0.0
  %1882 = vmatprep.subr.mxu0 0.0
  %1883 = vmatpush1.msra.mxu0 0.0
  %1884 = vmatprep.subr.mxu0 0.0
  %1885 = vmatpush1.msra.mxu0 0.0
  %1886 = vmatprep.subr.mxu0 0.0
  %1887 = vmatpush1.msra.mxu0 0.0
  %1888 = vmatprep.subr.mxu0 0.0
  %1889 = vmatpush1.msra.mxu0 0.0
  %1890 = vmatprep.subr.mxu0 0.0
  %1891 = vmatpush1.msra.mxu0 0.0
  %1892 = vmatprep.subr.mxu0 0.0
  %1893 = vmatpush1.msra.mxu0 0.0
  %1894 = vmatprep.subr.mxu0 0.0
  %1895 = vmatpush1.msra.mxu0 0.0
  %1896 = vmatprep.subr.mxu0 0.0
  %1897 = vmatpush1.msra.mxu0 0.0
  %1898 = vmatprep.subr.mxu0 0.0
  %1899 = vmatpush1.msra.mxu0 0.0
  %1900 = vmatprep.subr.mxu0 0.0
  %1901 = vmatpush1.msra.mxu0 0.0
  %1902 = vmatprep.subr.mxu0 0.0
  %1903 = vmatpush1.msra.mxu0 0.0
  %1904 = vmatprep.subr.mxu0 0.0
  %1905 = vmatpush1.msra.mxu0 0.0
  %1906 = vmatprep.subr.mxu0 0.0
  %1907 = vmatpush1.msra.mxu0 0.0
  %1908 = vmatprep.subr.mxu0 0.0
  %1909 = vmatpush1.msra.mxu0 0.0
  %1910 = vmatprep.subr.mxu0 0.0
  %1911 = vmatpush1.msra.mxu0 0.0
  %1912 = vmatprep.subr.mxu0 0.0
  %1913 = vmatpush1.msra.mxu0 0.0
  %1914 = vmatprep.subr.mxu0 0.0
  %1915 = vmatpush1.msra.mxu0 0.0
  %1916 = vmatprep.subr.mxu0 0.0
  %1917 = vmatpush1.msra.mxu0 0.0
  %1918 = vmatprep.mubr.f32.mxu0 0.0
  %1919 = vmatmul.mubr.f32.gmra.mrb[0].mxu0 %v1852
  %v1920 = vpop.f32.mrb[0].mxu0
  %v1921 = vadd.f32 0.0, %v1920
  %v1922 = vpop.f32.mrb[0].mxu0
  %1923 = vdwg.mxu0
  %v1925 = vsel %vm292, %v1834, 0
  %1927 = vmatprep.subr.mxu0 0.0
  %1928 = vmatpush1.msra.mxu0 %v1842
  %1929 = vmatprep.subr.mxu0 0.0
  %1930 = vmatpush1.msra.mxu0 %v1843
  %1931 = vmatprep.subr.mxu0 0.0
  %1932 = vmatpush1.msra.mxu0 %v1844
  %1933 = vmatprep.subr.mxu0 0.0
  %1934 = vmatpush1.msra.mxu0 %v1845
  %1935 = vmatprep.subr.mxu0 0.0
  %1936 = vmatpush1.msra.mxu0 0.0
  %1937 = vmatprep.subr.mxu0 0.0
  %1938 = vmatpush1.msra.mxu0 0.0
  %1939 = vmatprep.subr.mxu0 0.0
  %1940 = vmatpush1.msra.mxu0 0.0
  %1941 = vmatprep.subr.mxu0 0.0
  %1942 = vmatpush1.msra.mxu0 0.0
  %1943 = vmatprep.subr.mxu0 0.0
  %1944 = vmatpush1.msra.mxu0 0.0
  %1945 = vmatprep.subr.mxu0 0.0
  %1946 = vmatpush1.msra.mxu0 0.0
  %1947 = vmatprep.subr.mxu0 0.0
  %1948 = vmatpush1.msra.mxu0 0.0
  %1949 = vmatprep.subr.mxu0 0.0
  %1950 = vmatpush1.msra.mxu0 0.0
  %1951 = vmatprep.subr.mxu0 0.0
  %1952 = vmatpush1.msra.mxu0 0.0
  %1953 = vmatprep.subr.mxu0 0.0
  %1954 = vmatpush1.msra.mxu0 0.0
  %1955 = vmatprep.subr.mxu0 0.0
  %1956 = vmatpush1.msra.mxu0 0.0
  %1957 = vmatprep.subr.mxu0 0.0
  %1958 = vmatpush1.msra.mxu0 0.0
  %1959 = vmatprep.subr.mxu0 0.0
  %1960 = vmatpush1.msra.mxu0 0.0
  %1961 = vmatprep.subr.mxu0 0.0
  %1962 = vmatpush1.msra.mxu0 0.0
  %1963 = vmatprep.subr.mxu0 0.0
  %1964 = vmatpush1.msra.mxu0 0.0
  %1965 = vmatprep.subr.mxu0 0.0
  %1966 = vmatpush1.msra.mxu0 0.0
  %1967 = vmatprep.subr.mxu0 0.0
  %1968 = vmatpush1.msra.mxu0 0.0
  %1969 = vmatprep.subr.mxu0 0.0
  %1970 = vmatpush1.msra.mxu0 0.0
  %1971 = vmatprep.subr.mxu0 0.0
  %1972 = vmatpush1.msra.mxu0 0.0
  %1973 = vmatprep.subr.mxu0 0.0
  %1974 = vmatpush1.msra.mxu0 0.0
  %1975 = vmatprep.subr.mxu0 0.0
  %1976 = vmatpush1.msra.mxu0 0.0
  %1977 = vmatprep.subr.mxu0 0.0
  %1978 = vmatpush1.msra.mxu0 0.0
  %1979 = vmatprep.subr.mxu0 0.0
  %1980 = vmatpush1.msra.mxu0 0.0
  %1981 = vmatprep.subr.mxu0 0.0
  %1982 = vmatpush1.msra.mxu0 0.0
  %1983 = vmatprep.subr.mxu0 0.0
  %1984 = vmatpush1.msra.mxu0 0.0
  %1985 = vmatprep.subr.mxu0 0.0
  %1986 = vmatpush1.msra.mxu0 0.0
  %1987 = vmatprep.subr.mxu0 0.0
  %1988 = vmatpush1.msra.mxu0 0.0
  %1989 = vmatprep.subr.mxu0 0.0
  %1990 = vmatpush1.msra.mxu0 0.0
  %1991 = vmatprep.mubr.f32.mxu0 0.0
  %1992 = vmatmul.mubr.f32.gmra.mrb[0].mxu0 %v1925
  %v1993 = vpop.f32.mrb[0].mxu0
  %v1994 = vadd.f32 %v1921, %v1993
  %v1995 = vpop.f32.mrb[0].mxu0
  %1996 = vdwg.mxu0
  %s1997 = scalar_lea.vmem %s4, 64
  %v1998 = vld [vmem:[%s1997] sm:$0xff]
  %v1999 = vld [vmem:[%s1997 + $0x8] sm:$0xff]
  %v2000 = vld [vmem:[%s1997 + $0x10] sm:$0xff]
  %v2001 = vld [vmem:[%s1997 + $0x18] sm:$0xff]
  %v2003 = vsel %vm292, %v1836, 0
  %2005 = vmatprep.subr.mxu0 0.0
  %2006 = vmatpush1.msra.mxu0 %v1998
  %2007 = vmatprep.subr.mxu0 0.0
  %2008 = vmatpush1.msra.mxu0 %v1999
  %2009 = vmatprep.subr.mxu0 0.0
  %2010 = vmatpush1.msra.mxu0 %v2000
  %2011 = vmatprep.subr.mxu0 0.0
  %2012 = vmatpush1.msra.mxu0 %v2001
  %2013 = vmatprep.subr.mxu0 0.0
  %2014 = vmatpush1.msra.mxu0 0.0
  %2015 = vmatprep.subr.mxu0 0.0
  %2016 = vmatpush1.msra.mxu0 0.0
  %2017 = vmatprep.subr.mxu0 0.0
  %2018 = vmatpush1.msra.mxu0 0.0
  %2019 = vmatprep.subr.mxu0 0.0
  %2020 = vmatpush1.msra.mxu0 0.0
  %2021 = vmatprep.subr.mxu0 0.0
  %2022 = vmatpush1.msra.mxu0 0.0
  %2023 = vmatprep.subr.mxu0 0.0
  %2024 = vmatpush1.msra.mxu0 0.0
  %2025 = vmatprep.subr.mxu0 0.0
  %2026 = vmatpush1.msra.mxu0 0.0
  %2027 = vmatprep.subr.mxu0 0.0
  %2028 = vmatpush1.msra.mxu0 0.0
  %2029 = vmatprep.subr.mxu0 0.0
  %2030 = vmatpush1.msra.mxu0 0.0
  %2031 = vmatprep.subr.mxu0 0.0
  %2032 = vmatpush1.msra.mxu0 0.0
  %2033 = vmatprep.subr.mxu0 0.0
  %2034 = vmatpush1.msra.mxu0 0.0
  %2035 = vmatprep.subr.mxu0 0.0
  %2036 = vmatpush1.msra.mxu0 0.0
  %2037 = vmatprep.subr.mxu0 0.0
  %2038 = vmatpush1.msra.mxu0 0.0
  %2039 = vmatprep.subr.mxu0 0.0
  %2040 = vmatpush1.msra.mxu0 0.0
  %2041 = vmatprep.subr.mxu0 0.0
  %2042 = vmatpush1.msra.mxu0 0.0
  %2043 = vmatprep.subr.mxu0 0.0
  %2044 = vmatpush1.msra.mxu0 0.0
  %2045 = vmatprep.subr.mxu0 0.0
  %2046 = vmatpush1.msra.mxu0 0.0
  %2047 = vmatprep.subr.mxu0 0.0
  %2048 = vmatpush1.msra.mxu0 0.0
  %2049 = vmatprep.subr.mxu0 0.0
  %2050 = vmatpush1.msra.mxu0 0.0
  %2051 = vmatprep.subr.mxu0 0.0
  %2052 = vmatpush1.msra.mxu0 0.0
  %2053 = vmatprep.subr.mxu0 0.0
  %2054 = vmatpush1.msra.mxu0 0.0
  %2055 = vmatprep.subr.mxu0 0.0
  %2056 = vmatpush1.msra.mxu0 0.0
  %2057 = vmatprep.subr.mxu0 0.0
  %2058 = vmatpush1.msra.mxu0 0.0
  %2059 = vmatprep.subr.mxu0 0.0
  %2060 = vmatpush1.msra.mxu0 0.0
  %2061 = vmatprep.subr.mxu0 0.0
  %2062 = vmatpush1.msra.mxu0 0.0
  %2063 = vmatprep.subr.mxu0 0.0
  %2064 = vmatpush1.msra.mxu0 0.0
  %2065 = vmatprep.subr.mxu0 0.0
  %2066 = vmatpush1.msra.mxu0 0.0
  %2067 = vmatprep.subr.mxu0 0.0
  %2068 = vmatpush1.msra.mxu0 0.0
  %2069 = vmatprep.mubr.f32.mxu0 0.0
  %2070 = vmatmul.mubr.f32.gmra.mrb[0].mxu0 %v2003
  %v2071 = vpop.f32.mrb[0].mxu0
  %v2072 = vadd.f32 0.0, %v2071
  %v2073 = vpop.f32.mrb[0].mxu0
  %2074 = vdwg.mxu0
  %v2075 = vadd.f32 %v1994, %v2072
  %s2076 = scalar_lea.vmem %s4, 96
  %v2077 = vld [vmem:[%s2076] sm:$0xff]
  %v2078 = vld [vmem:[%s2076 + $0x8] sm:$0xff]
  %v2079 = vld [vmem:[%s2076 + $0x10] sm:$0xff]
  %v2080 = vld [vmem:[%s2076 + $0x18] sm:$0xff]
  %v2082 = vsel %vm292, %v1837, 0
  %2084 = vmatprep.subr.mxu0 0.0
  %2085 = vmatpush1.msra.mxu0 %v2077
  %2086 = vmatprep.subr.mxu0 0.0
  %2087 = vmatpush1.msra.mxu0 %v2078
  %2088 = vmatprep.subr.mxu0 0.0
  %2089 = vmatpush1.msra.mxu0 %v2079
  %2090 = vmatprep.subr.mxu0 0.0
  %2091 = vmatpush1.msra.mxu0 %v2080
  %2092 = vmatprep.subr.mxu0 0.0
  %2093 = vmatpush1.msra.mxu0 0.0
  %2094 = vmatprep.subr.mxu0 0.0
  %2095 = vmatpush1.msra.mxu0 0.0
  %2096 = vmatprep.subr.mxu0 0.0
  %2097 = vmatpush1.msra.mxu0 0.0
  %2098 = vmatprep.subr.mxu0 0.0
  %2099 = vmatpush1.msra.mxu0 0.0
  %2100 = vmatprep.subr.mxu0 0.0
  %2101 = vmatpush1.msra.mxu0 0.0
  %2102 = vmatprep.subr.mxu0 0.0
  %2103 = vmatpush1.msra.mxu0 0.0
  %2104 = vmatprep.subr.mxu0 0.0
  %2105 = vmatpush1.msra.mxu0 0.0
  %2106 = vmatprep.subr.mxu0 0.0
  %2107 = vmatpush1.msra.mxu0 0.0
  %2108 = vmatprep.subr.mxu0 0.0
  %2109 = vmatpush1.msra.mxu0 0.0
  %2110 = vmatprep.subr.mxu0 0.0
  %2111 = vmatpush1.msra.mxu0 0.0
  %2112 = vmatprep.subr.mxu0 0.0
  %2113 = vmatpush1.msra.mxu0 0.0
  %2114 = vmatprep.subr.mxu0 0.0
  %2115 = vmatpush1.msra.mxu0 0.0
  %2116 = vmatprep.subr.mxu0 0.0
  %2117 = vmatpush1.msra.mxu0 0.0
  %2118 = vmatprep.subr.mxu0 0.0
  %2119 = vmatpush1.msra.mxu0 0.0
  %2120 = vmatprep.subr.mxu0 0.0
  %2121 = vmatpush1.msra.mxu0 0.0
  %2122 = vmatprep.subr.mxu0 0.0
  %2123 = vmatpush1.msra.mxu0 0.0
  %2124 = vmatprep.subr.mxu0 0.0
  %2125 = vmatpush1.msra.mxu0 0.0
  %2126 = vmatprep.subr.mxu0 0.0
  %2127 = vmatpush1.msra.mxu0 0.0
  %2128 = vmatprep.subr.mxu0 0.0
  %2129 = vmatpush1.msra.mxu0 0.0
  %2130 = vmatprep.subr.mxu0 0.0
  %2131 = vmatpush1.msra.mxu0 0.0
  %2132 = vmatprep.subr.mxu0 0.0
  %2133 = vmatpush1.msra.mxu0 0.0
  %2134 = vmatprep.subr.mxu0 0.0
  %2135 = vmatpush1.msra.mxu0 0.0
  %2136 = vmatprep.subr.mxu0 0.0
  %2137 = vmatpush1.msra.mxu0 0.0
  %2138 = vmatprep.subr.mxu0 0.0
  %2139 = vmatpush1.msra.mxu0 0.0
  %2140 = vmatprep.subr.mxu0 0.0
  %2141 = vmatpush1.msra.mxu0 0.0
  %2142 = vmatprep.subr.mxu0 0.0
  %2143 = vmatpush1.msra.mxu0 0.0
  %2144 = vmatprep.subr.mxu0 0.0
  %2145 = vmatpush1.msra.mxu0 0.0
  %2146 = vmatprep.subr.mxu0 0.0
  %2147 = vmatpush1.msra.mxu0 0.0
  %2148 = vmatprep.mubr.f32.mxu0 0.0
  %2149 = vmatmul.mubr.f32.gmra.mrb[0].mxu0 %v2082
  %v2150 = vpop.f32.mrb[0].mxu0
  %v2151 = vadd.f32 0.0, %v2150
  %v2152 = vpop.f32.mrb[0].mxu0
  %2153 = vdwg.mxu0
  %v2154 = vadd.f32 %v2075, %v2151
  %v2155 = vld [vmem:[%s1 + $0x26] sm:$0x1]
  %v2156 = vlaneseq
  %v2157 = vshrl.u32 %v2156, 7
  %v2158 = vsub.s32 0, %v2157
  %v2159 = vrot.slane %v2155, %v2158
  %v2160 = vadd.f32 %v2154, %v2159
  %2161 = vst [vmem:[%s5] sm:$0xff] %v2160
  // Predicated region
  $region22: #{encoder_forward.1} parent=0 // pred_check
    _
  $region23: #{encoder_forward.1} parent=0 // pred_check_branch
    %2163 = sbr.rel (0) target = $region25
  $region24: #{encoder_forward.1} parent=0 // pred_region
    _
  $region25: #{encoder_forward.1} parent=0 // pred_fallthru
    _
  // Predicated region
  $region26: #{encoder_forward.1} parent=0 // pred_check
    _
  $region27: #{encoder_forward.1} parent=0 // pred_check_branch
    %2165 = sbr.rel (0) target = $region29
  $region28: #{encoder_forward.1} parent=0 // pred_region
    _
  $region29: #{encoder_forward.1} parent=0 // pred_fallthru
    _
  // Predicated region
  $region30: #{encoder_forward.1} parent=0 // pred_check
    _
  $region31: #{encoder_forward.1} parent=0 // pred_check_branch
    %2167 = sbr.rel (0) target = $region33
  $region32: #{encoder_forward.1} parent=0 // pred_region
    _
  $region33: #{encoder_forward.1} parent=0 // pred_fallthru
    _
  // Predicated region
  $region34: #{encoder_forward.1} parent=0 // pred_check
    _
  $region35: #{encoder_forward.1} parent=0 // pred_check_branch
    %2169 = sbr.rel (0) target = $region37
  $region36: #{encoder_forward.1} parent=0 // pred_region
    _
  $region37: #{encoder_forward.1} parent=0 // pred_fallthru
    _

</llo_original>
